<compile_context>
chip_gen: v5e
topology: v5e:2x2
jax: 0.10.0
libtpu: 0.0.40
codegen_flags: <defaults>
</compile_context>

<pallas_src>
import jax
import jax.numpy as jnp
from jax.experimental import pallas as pl
from jax.experimental.pallas import tpu as pltpu

# ----------------------- synthetic backbone config -----------------------
VOCAB = 128              # one lane tile -> one-hot gather is a single MXU pass
SEQ = 8
HIDDEN = 32
HEADS = 2
HEAD_DIM = HIDDEN // HEADS
FFN = 64
LAYERS = 2
NUM_TARGETS = 3
BATCH = 2
LN_EPS = 1e-12
PAD_OUT = 128            # lane-dense padded width for the final fc output


# ------------------------------ fused kernel ------------------------------
def _fused_forward_kernel(
    ids_ref, mask_ref, tok_emb_ref, pos_emb_ref, emb_g_ref, emb_b_ref,
    wq_ref, wk_ref, wv_ref, bq_ref, bk_ref, bv_ref, wo_ref, bo_ref,
    w1_ref, b1_ref, w2_ref, b2_ref,
    ln1_g_ref, ln1_b_ref, ln2_g_ref, ln2_b_ref,
    fcw_ref, fcb_ref,
    out_ref,
):
    """Whole model forward on VMEM-resident tensors (no grid, no scratch)."""
    B, S = mask_ref.shape
    BS = ids_ref.shape[0]
    V, H = tok_emb_ref.shape
    L, NH, _, Dh = wq_ref.shape

    def layer_norm(v, g, b):
        mu = jnp.mean(v, axis=-1, keepdims=True)
        var = jnp.mean(jnp.square(v - mu), axis=-1, keepdims=True)
        return (v - mu) * jax.lax.rsqrt(var + LN_EPS) * g + b

    # ---- embedding: one-hot gather on the MXU (token-id lookup fused in) ----
    lane_ids = jax.lax.broadcasted_iota(jnp.int32, (BS, V), 1)
    onehot = jnp.where(ids_ref[...] == lane_ids, 1.0, 0.0)            # (BS, V) f32
    x = jnp.dot(onehot, tok_emb_ref[...], preferred_element_type=jnp.float32)
    x = x + jnp.concatenate([pos_emb_ref[...]] * B, axis=0)           # tile pos over batch
    x = layer_norm(x, emb_g_ref[...], emb_b_ref[...])

    # ---- additive attention mask built in-kernel from the raw int mask ----
    neg_mask = (1.0 - mask_ref[...].astype(jnp.float32)) * jnp.float32(-1e9)   # (B, S)

    for l in range(L):
        # Per-head Q/K/V projections over all rows at once (weights packed
        # head-major; 1/sqrt(Dh) already folded into wq/bq). No lane
        # sub-slicing of values anywhere in the attention loop.
        head_q = [jnp.dot(x, wq_ref[l, h], preferred_element_type=jnp.float32)
                  + bq_ref[l, h] for h in range(NH)]
        head_k = [jnp.dot(x, wk_ref[l, h], preferred_element_type=jnp.float32)
                  + bk_ref[l, h] for h in range(NH)]
        head_v = [jnp.dot(x, wv_ref[l, h], preferred_element_type=jnp.float32)
                  + bv_ref[l, h] for h in range(NH)]

        # Masked multi-head attention, statically unrolled over (b, h); the
        # per-head context tiles stay as values and are concatenated
        # (heads -> lanes, batches -> sublanes) before the output projection.
        batch_ctx = []
        for b in range(B):
            bias = neg_mask[b:b + 1, :]                 # (1, S), broadcasts over queries
            r0, r1 = b * S, (b + 1) * S
            head_ctx = []
            for h in range(NH):
                q = head_q[h][r0:r1]                    # (S, Dh), sublane-aligned slice
                k = head_k[h][r0:r1]
                v = head_v[h][r0:r1]
                s = jax.lax.dot_general(q, k, (((1,), (1,)), ((), ())),
                                        preferred_element_type=jnp.float32) + bias
                s = s - jnp.max(s, axis=-1, keepdims=True)
                p = jnp.exp(s)
                p = p / jnp.sum(p, axis=-1, keepdims=True)   # exact softmax denom
                head_ctx.append(jnp.dot(p, v, preferred_element_type=jnp.float32))
            batch_ctx.append(jnp.concatenate(head_ctx, axis=1))        # (S, HIDDEN)
        ctx = jnp.concatenate(batch_ctx, axis=0)                       # (BS, HIDDEN)

        # ---- attention output projection + residual LN ----
        attn_out = (jnp.dot(ctx, wo_ref[l], preferred_element_type=jnp.float32)
                    + bo_ref[l])
        x = layer_norm(attn_out + x, ln1_g_ref[l], ln1_b_ref[l])

        # ---- FFN + residual LN ----
        # TODO(synk): tanh-approximate GELU; torch.nn.GELU / HF BERT default is exact erf.
        hdn = jax.nn.gelu(
            jnp.dot(x, w1_ref[l], preferred_element_type=jnp.float32) + b1_ref[l],
            approximate=True)
        ffn_out = jnp.dot(hdn, w2_ref[l], preferred_element_type=jnp.float32) + b2_ref[l]
        x = layer_norm(ffn_out + x, ln2_g_ref[l], ln2_b_ref[l])

    # ---- select CLS rows (token 0 of every sequence) inside the kernel ----
    cls = jnp.concatenate([x[b * S:b * S + 1, :] for b in range(B)], axis=0)   # (B, HIDDEN)

    # ---- final fc: (B, HIDDEN) @ (HIDDEN, 128) lane-dense padded store ----
    out_ref[...] = (jnp.dot(cls, fcw_ref[...], preferred_element_type=jnp.float32)
                    + fcb_ref[...]).astype(out_ref.dtype)


# ----------------------------- parameters ----------------------------------
def init_params(key):
    ks = jax.random.split(key, 4 + LAYERS)
    std = 0.02

    def nrm(k, shape):
        return (jax.random.normal(k, shape, jnp.float32) * std).astype(jnp.float32)

    params = {
        "tok_emb": nrm(ks[0], (VOCAB, HIDDEN)),
        "pos_emb": nrm(ks[1], (SEQ, HIDDEN)),
        "emb_ln_g": jnp.ones((HIDDEN,), jnp.float32),
        "emb_ln_b": jnp.zeros((HIDDEN,), jnp.float32),
        "fc_w": nrm(ks[2], (HIDDEN, NUM_TARGETS)),
        "fc_b": jnp.zeros((NUM_TARGETS,), jnp.float32),
        "layers": [],
    }
    for l in range(LAYERS):
        lk = jax.random.split(ks[4 + l], 8)
        params["layers"].append({
            "wq": nrm(lk[0], (HIDDEN, HIDDEN)), "bq": jnp.zeros((HIDDEN,), jnp.float32),
            "wk": nrm(lk[1], (HIDDEN, HIDDEN)), "bk": jnp.zeros((HIDDEN,), jnp.float32),
            "wv": nrm(lk[2], (HIDDEN, HIDDEN)), "bv": jnp.zeros((HIDDEN,), jnp.float32),
            "wo": nrm(lk[3], (HIDDEN, HIDDEN)), "bo": jnp.zeros((HIDDEN,), jnp.float32),
            "w1": nrm(lk[4], (HIDDEN, FFN)),    "b1": jnp.zeros((FFN,), jnp.float32),
            "w2": nrm(lk[5], (FFN, HIDDEN)),    "b2": jnp.zeros((HIDDEN,), jnp.float32),
            "ln1_g": jnp.ones((HIDDEN,), jnp.float32), "ln1_b": jnp.zeros((HIDDEN,), jnp.float32),
            "ln2_g": jnp.ones((HIDDEN,), jnp.float32), "ln2_b": jnp.zeros((HIDDEN,), jnp.float32),
        })
    return params


def pack_params(params):
    """One-time weight packing: head-major Q/K/V with 1/sqrt(Dh) folded into Q,
    stacked per-layer tensors, lane-padded fc weights."""
    L = params["layers"]
    scale = jnp.float32(1.0 / (HEAD_DIM ** 0.5))

    def split_heads_w(w):                       # (H, H) -> (NH, H, Dh)
        return w.reshape(HIDDEN, HEADS, HEAD_DIM).transpose(1, 0, 2)

    def split_heads_b(b):                       # (H,)   -> (NH, 1, Dh)
        return b.reshape(HEADS, 1, HEAD_DIM)

    fc_w_pad = jnp.zeros((HIDDEN, PAD_OUT), jnp.float32).at[:, :NUM_TARGETS].set(params["fc_w"])
    fc_b_pad = jnp.zeros((1, PAD_OUT), jnp.float32).at[0, :NUM_TARGETS].set(params["fc_b"])

    return {
        "tok_emb": params["tok_emb"],                      # (VOCAB=128, H)
        "pos_emb": params["pos_emb"],                      # (S, H)
        "emb_g": params["emb_ln_g"].reshape(1, HIDDEN),
        "emb_b": params["emb_ln_b"].reshape(1, HIDDEN),
        # 1/sqrt(Dh) folded into Q weight + bias (free one-time transform):
        "wq": jnp.stack([split_heads_w(l["wq"]) * scale for l in L]),   # (L, NH, H, Dh)
        "bq": jnp.stack([split_heads_b(l["bq"]) * scale for l in L]),   # (L, NH, 1, Dh)
        "wk": jnp.stack([split_heads_w(l["wk"]) for l in L]),
        "bk": jnp.stack([split_heads_b(l["bk"]) for l in L]),
        "wv": jnp.stack([split_heads_w(l["wv"]) for l in L]),
        "bv": jnp.stack([split_heads_b(l["bv"]) for l in L]),
        "wo": jnp.stack([l["wo"] for l in L]),                          # (L, H, H)
        "bo": jnp.stack([l["bo"][None, :] for l in L]),                 # (L, 1, H)
        "w1": jnp.stack([l["w1"] for l in L]),                          # (L, H, FFN)
        "b1": jnp.stack([l["b1"][None, :] for l in L]),                 # (L, 1, FFN)
        "w2": jnp.stack([l["w2"] for l in L]),                          # (L, FFN, H)
        "b2": jnp.stack([l["b2"][None, :] for l in L]),                 # (L, 1, H)
        "ln1_g": jnp.stack([l["ln1_g"][None, :] for l in L]),
        "ln1_b": jnp.stack([l["ln1_b"][None, :] for l in L]),
        "ln2_g": jnp.stack([l["ln2_g"][None, :] for l in L]),
        "ln2_b": jnp.stack([l["ln2_b"][None, :] for l in L]),
        "fc_w": fc_w_pad,                                               # (H, 128)
        "fc_b": fc_b_pad,                                               # (1, 128)
    }


# ------------------------------ forward ------------------------------------
def my_model_forward(packed, input_ids, attention_mask):
    B, S = input_ids.shape

    # Only remaining wrapper glue: a tiny reshape of the token ids (the
    # embedding gather itself runs in-kernel as a one-hot MXU matmul) and the
    # final column slice of the padded logits.
    ids = input_ids.reshape(B * S, 1).astype(jnp.int32)
    mask = attention_mask.astype(jnp.int32)

    operands = (
        ids, mask, packed["tok_emb"], packed["pos_emb"], packed["emb_g"], packed["emb_b"],
        packed["wq"], packed["wk"], packed["wv"], packed["bq"], packed["bk"], packed["bv"],
        packed["wo"], packed["bo"], packed["w1"], packed["b1"], packed["w2"], packed["b2"],
        packed["ln1_g"], packed["ln1_b"], packed["ln2_g"], packed["ln2_b"],
        packed["fc_w"], packed["fc_b"],
    )

    out = pl.pallas_call(
        _fused_forward_kernel,
        out_shape=jax.ShapeDtypeStruct((B, PAD_OUT), jnp.float32),
        in_specs=[pl.BlockSpec(memory_space=pltpu.MemorySpace.VMEM) for _ in operands],
        out_specs=pl.BlockSpec(memory_space=pltpu.MemorySpace.VMEM),
    )(*operands)

    # Dropout: identity at inference (PyTorch eval mode).
    # TODO(synk): training-mode dropout (pltpu.prng_*) omitted for eval parity.
    return out[:, :NUM_TARGETS]


# -------------------------------- main --------------------------------------
if __name__ == "__main__":
    key = jax.random.PRNGKey(0)
    pkey, ikey = jax.random.split(key)
    params = init_params(pkey)
    packed = pack_params(params)

    input_ids = jax.random.randint(ikey, (BATCH, SEQ), 0, VOCAB, dtype=jnp.int32)
    attention_mask = jnp.ones((BATCH, SEQ), dtype=jnp.int32).at[1, SEQ - 2:].set(0)

    logits = jax.jit(my_model_forward)(packed, input_ids, attention_mask)
    jax.block_until_ready(logits)
    assert logits.shape == (BATCH, NUM_TARGETS)
    assert logits.dtype == jnp.float32
    print("KERNEL_OK")
</pallas_src>

<mosaic_0001>
module attributes {stable_mosaic.version = 11 : i64} {
  func.func @_fused_forward_kernel(%arg0: memref<16x1xi32, #tpu.memory_space<vmem>>, %arg1: memref<2x8xi32, #tpu.memory_space<vmem>>, %arg2: memref<128x32xf32, #tpu.memory_space<vmem>>, %arg3: memref<8x32xf32, #tpu.memory_space<vmem>>, %arg4: memref<1x32xf32, #tpu.memory_space<vmem>>, %arg5: memref<1x32xf32, #tpu.memory_space<vmem>>, %arg6: memref<2x2x32x16xf32, #tpu.memory_space<vmem>>, %arg7: memref<2x2x32x16xf32, #tpu.memory_space<vmem>>, %arg8: memref<2x2x32x16xf32, #tpu.memory_space<vmem>>, %arg9: memref<2x2x1x16xf32, #tpu.memory_space<vmem>>, %arg10: memref<2x2x1x16xf32, #tpu.memory_space<vmem>>, %arg11: memref<2x2x1x16xf32, #tpu.memory_space<vmem>>, %arg12: memref<2x32x32xf32, #tpu.memory_space<vmem>>, %arg13: memref<2x1x32xf32, #tpu.memory_space<vmem>>, %arg14: memref<2x32x64xf32, #tpu.memory_space<vmem>>, %arg15: memref<2x1x64xf32, #tpu.memory_space<vmem>>, %arg16: memref<2x64x32xf32, #tpu.memory_space<vmem>>, %arg17: memref<2x1x32xf32, #tpu.memory_space<vmem>>, %arg18: memref<2x1x32xf32, #tpu.memory_space<vmem>>, %arg19: memref<2x1x32xf32, #tpu.memory_space<vmem>>, %arg20: memref<2x1x32xf32, #tpu.memory_space<vmem>>, %arg21: memref<2x1x32xf32, #tpu.memory_space<vmem>>, %arg22: memref<32x128xf32, #tpu.memory_space<vmem>>, %arg23: memref<1x128xf32, #tpu.memory_space<vmem>>, %arg24: memref<2x128xf32, #tpu.memory_space<vmem>>) attributes {dimension_semantics = [], scalar_prefetch = 0 : i64, scratch_operands = 0 : i64, tpu.core_type = #tpu.core_type<tc>} {
    %0 = tpu.iota {dimensions = array<i32: 1>} : vector<16x128xi32>
    %c0 = arith.constant 0 : index
    %c0_0 = arith.constant 0 : index
    %1 = vector.load %arg0[%c0, %c0_0] : memref<16x1xi32, #tpu.memory_space<vmem>>, vector<16x1xi32>
    %2 = vector.broadcast %1 : vector<16x1xi32> to vector<16x128xi32>
    %3 = arith.cmpi eq, %2, %0 : vector<16x128xi32>
    %cst = arith.constant 1.000000e+00 : f32
    %cst_1 = arith.constant 0.000000e+00 : f32
    %4 = vector.broadcast %cst : f32 to vector<16x128xf32>
    %5 = vector.broadcast %cst_1 : f32 to vector<16x128xf32>
    %6 = arith.select %3, %4, %5 : vector<16x128xi1>, vector<16x128xf32>
    %c0_2 = arith.constant 0 : index
    %c0_3 = arith.constant 0 : index
    %7 = vector.load %arg2[%c0_2, %c0_3] : memref<128x32xf32, #tpu.memory_space<vmem>>, vector<128x32xf32>
    %cst_4 = arith.constant dense<0.000000e+00> : vector<16x32xf32>
    %8 = tpu.matmul %6, %7, %cst_4 {dimension_numbers = #tpu.dot_dimension_numbers<[1], [0], [0], [1], [0, 0, 1, 1], [], []>} : vector<16x128xf32>, vector<128x32xf32>, vector<16x32xf32> -> vector<16x32xf32>
    %c0_5 = arith.constant 0 : index
    %c0_6 = arith.constant 0 : index
    %9 = vector.load %arg3[%c0_5, %c0_6] : memref<8x32xf32, #tpu.memory_space<vmem>>, vector<8x32xf32>
    %10 = tpu.concatenate %9, %9 in 0 : vector<8x32xf32>, vector<8x32xf32> -> vector<16x32xf32>
    %11 = arith.addf %8, %10 : vector<16x32xf32>
    %c0_7 = arith.constant 0 : index
    %c0_8 = arith.constant 0 : index
    %12 = vector.load %arg4[%c0_7, %c0_8] : memref<1x32xf32, #tpu.memory_space<vmem>>, vector<1x32xf32>
    %c0_9 = arith.constant 0 : index
    %c0_10 = arith.constant 0 : index
    %13 = vector.load %arg5[%c0_9, %c0_10] : memref<1x32xf32, #tpu.memory_space<vmem>>, vector<1x32xf32>
    %cst_11 = arith.constant dense<0.000000e+00> : vector<16xf32>
    %14 = vector.multi_reduction <add>, %11, %cst_11 [1] : vector<16x32xf32> to vector<16xf32>
    %15 = vector.shape_cast %14 : vector<16xf32> to vector<16x1xf32>
    %cst_12 = arith.constant 3.200000e+01 : f32
    %16 = vector.broadcast %cst_12 : f32 to vector<16x1xf32>
    %17 = arith.divf %15, %16 : vector<16x1xf32>
    %18 = vector.broadcast %17 : vector<16x1xf32> to vector<16x32xf32>
    %19 = arith.subf %11, %18 : vector<16x32xf32>
    %20 = arith.mulf %19, %19 : vector<16x32xf32>
    %cst_13 = arith.constant dense<0.000000e+00> : vector<16xf32>
    %21 = vector.multi_reduction <add>, %20, %cst_13 [1] : vector<16x32xf32> to vector<16xf32>
    %22 = vector.shape_cast %21 : vector<16xf32> to vector<16x1xf32>
    %cst_14 = arith.constant 3.200000e+01 : f32
    %23 = vector.broadcast %cst_14 : f32 to vector<16x1xf32>
    %24 = arith.divf %22, %23 : vector<16x1xf32>
    %25 = vector.broadcast %17 : vector<16x1xf32> to vector<16x32xf32>
    %26 = arith.subf %11, %25 : vector<16x32xf32>
    %cst_15 = arith.constant 9.99999996E-13 : f32
    %27 = vector.broadcast %cst_15 : f32 to vector<16x1xf32>
    %28 = arith.addf %24, %27 : vector<16x1xf32>
    %29 = math.rsqrt %28 : vector<16x1xf32>
    %30 = vector.broadcast %29 : vector<16x1xf32> to vector<16x32xf32>
    %31 = arith.mulf %26, %30 : vector<16x32xf32>
    %32 = vector.broadcast %12 : vector<1x32xf32> to vector<16x32xf32>
    %33 = arith.mulf %31, %32 : vector<16x32xf32>
    %34 = vector.broadcast %13 : vector<1x32xf32> to vector<16x32xf32>
    %35 = arith.addf %33, %34 : vector<16x32xf32>
    %c0_16 = arith.constant 0 : index
    %c0_17 = arith.constant 0 : index
    %36 = vector.load %arg1[%c0_16, %c0_17] : memref<2x8xi32, #tpu.memory_space<vmem>>, vector<2x8xi32>
    %37 = arith.sitofp %36 : vector<2x8xi32> to vector<2x8xf32>
    %cst_18 = arith.constant 1.000000e+00 : f32
    %38 = vector.broadcast %cst_18 : f32 to vector<2x8xf32>
    %39 = arith.subf %38, %37 : vector<2x8xf32>
    %cst_19 = arith.constant -1.000000e+09 : f32
    %40 = vector.broadcast %cst_19 : f32 to vector<2x8xf32>
    %41 = arith.mulf %39, %40 : vector<2x8xf32>
    %c0_20 = arith.constant 0 : index
    %c0_21 = arith.constant 0 : index
    %c0_22 = arith.constant 0 : index
    %c0_23 = arith.constant 0 : index
    %42 = vector.load %arg6[%c0_20, %c0_21, %c0_22, %c0_23] : memref<2x2x32x16xf32, #tpu.memory_space<vmem>>, vector<1x1x32x16xf32>
    %43 = vector.shape_cast %42 : vector<1x1x32x16xf32> to vector<32x16xf32>
    %cst_24 = arith.constant dense<0.000000e+00> : vector<16x16xf32>
    %44 = tpu.matmul %35, %43, %cst_24 {dimension_numbers = #tpu.dot_dimension_numbers<[1], [0], [0], [1], [0, 0, 1, 1], [], []>} : vector<16x32xf32>, vector<32x16xf32>, vector<16x16xf32> -> vector<16x16xf32>
    %c0_25 = arith.constant 0 : index
    %c0_26 = arith.constant 0 : index
    %c0_27 = arith.constant 0 : index
    %c0_28 = arith.constant 0 : index
    %45 = vector.load %arg9[%c0_25, %c0_26, %c0_27, %c0_28] : memref<2x2x1x16xf32, #tpu.memory_space<vmem>>, vector<1x1x1x16xf32>
    %46 = vector.shape_cast %45 : vector<1x1x1x16xf32> to vector<1x16xf32>
    %47 = vector.broadcast %46 : vector<1x16xf32> to vector<16x16xf32>
    %48 = arith.addf %44, %47 : vector<16x16xf32>
    %c0_29 = arith.constant 0 : index
    %c1 = arith.constant 1 : index
    %c0_30 = arith.constant 0 : index
    %c0_31 = arith.constant 0 : index
    %49 = vector.load %arg6[%c0_29, %c1, %c0_30, %c0_31] : memref<2x2x32x16xf32, #tpu.memory_space<vmem>>, vector<1x1x32x16xf32>
    %50 = vector.shape_cast %49 : vector<1x1x32x16xf32> to vector<32x16xf32>
    %cst_32 = arith.constant dense<0.000000e+00> : vector<16x16xf32>
    %51 = tpu.matmul %35, %50, %cst_32 {dimension_numbers = #tpu.dot_dimension_numbers<[1], [0], [0], [1], [0, 0, 1, 1], [], []>} : vector<16x32xf32>, vector<32x16xf32>, vector<16x16xf32> -> vector<16x16xf32>
    %c0_33 = arith.constant 0 : index
    %c1_34 = arith.constant 1 : index
    %c0_35 = arith.constant 0 : index
    %c0_36 = arith.constant 0 : index
    %52 = vector.load %arg9[%c0_33, %c1_34, %c0_35, %c0_36] : memref<2x2x1x16xf32, #tpu.memory_space<vmem>>, vector<1x1x1x16xf32>
    %53 = vector.shape_cast %52 : vector<1x1x1x16xf32> to vector<1x16xf32>
    %54 = vector.broadcast %53 : vector<1x16xf32> to vector<16x16xf32>
    %55 = arith.addf %51, %54 : vector<16x16xf32>
    %c0_37 = arith.constant 0 : index
    %c0_38 = arith.constant 0 : index
    %c0_39 = arith.constant 0 : index
    %c0_40 = arith.constant 0 : index
    %56 = vector.load %arg7[%c0_37, %c0_38, %c0_39, %c0_40] : memref<2x2x32x16xf32, #tpu.memory_space<vmem>>, vector<1x1x32x16xf32>
    %57 = vector.shape_cast %56 : vector<1x1x32x16xf32> to vector<32x16xf32>
    %cst_41 = arith.constant dense<0.000000e+00> : vector<16x16xf32>
    %58 = tpu.matmul %35, %57, %cst_41 {dimension_numbers = #tpu.dot_dimension_numbers<[1], [0], [0], [1], [0, 0, 1, 1], [], []>} : vector<16x32xf32>, vector<32x16xf32>, vector<16x16xf32> -> vector<16x16xf32>
    %c0_42 = arith.constant 0 : index
    %c0_43 = arith.constant 0 : index
    %c0_44 = arith.constant 0 : index
    %c0_45 = arith.constant 0 : index
    %59 = vector.load %arg10[%c0_42, %c0_43, %c0_44, %c0_45] : memref<2x2x1x16xf32, #tpu.memory_space<vmem>>, vector<1x1x1x16xf32>
    %60 = vector.shape_cast %59 : vector<1x1x1x16xf32> to vector<1x16xf32>
    %61 = vector.broadcast %60 : vector<1x16xf32> to vector<16x16xf32>
    %62 = arith.addf %58, %61 : vector<16x16xf32>
    %c0_46 = arith.constant 0 : index
    %c1_47 = arith.constant 1 : index
    %c0_48 = arith.constant 0 : index
    %c0_49 = arith.constant 0 : index
    %63 = vector.load %arg7[%c0_46, %c1_47, %c0_48, %c0_49] : memref<2x2x32x16xf32, #tpu.memory_space<vmem>>, vector<1x1x32x16xf32>
    %64 = vector.shape_cast %63 : vector<1x1x32x16xf32> to vector<32x16xf32>
    %cst_50 = arith.constant dense<0.000000e+00> : vector<16x16xf32>
    %65 = tpu.matmul %35, %64, %cst_50 {dimension_numbers = #tpu.dot_dimension_numbers<[1], [0], [0], [1], [0, 0, 1, 1], [], []>} : vector<16x32xf32>, vector<32x16xf32>, vector<16x16xf32> -> vector<16x16xf32>
    %c0_51 = arith.constant 0 : index
    %c1_52 = arith.constant 1 : index
    %c0_53 = arith.constant 0 : index
    %c0_54 = arith.constant 0 : index
    %66 = vector.load %arg10[%c0_51, %c1_52, %c0_53, %c0_54] : memref<2x2x1x16xf32, #tpu.memory_space<vmem>>, vector<1x1x1x16xf32>
    %67 = vector.shape_cast %66 : vector<1x1x1x16xf32> to vector<1x16xf32>
    %68 = vector.broadcast %67 : vector<1x16xf32> to vector<16x16xf32>
    %69 = arith.addf %65, %68 : vector<16x16xf32>
    %c0_55 = arith.constant 0 : index
    %c0_56 = arith.constant 0 : index
    %c0_57 = arith.constant 0 : index
    %c0_58 = arith.constant 0 : index
    %70 = vector.load %arg8[%c0_55, %c0_56, %c0_57, %c0_58] : memref<2x2x32x16xf32, #tpu.memory_space<vmem>>, vector<1x1x32x16xf32>
    %71 = vector.shape_cast %70 : vector<1x1x32x16xf32> to vector<32x16xf32>
    %cst_59 = arith.constant dense<0.000000e+00> : vector<16x16xf32>
    %72 = tpu.matmul %35, %71, %cst_59 {dimension_numbers = #tpu.dot_dimension_numbers<[1], [0], [0], [1], [0, 0, 1, 1], [], []>} : vector<16x32xf32>, vector<32x16xf32>, vector<16x16xf32> -> vector<16x16xf32>
    %c0_60 = arith.constant 0 : index
    %c0_61 = arith.constant 0 : index
    %c0_62 = arith.constant 0 : index
    %c0_63 = arith.constant 0 : index
    %73 = vector.load %arg11[%c0_60, %c0_61, %c0_62, %c0_63] : memref<2x2x1x16xf32, #tpu.memory_space<vmem>>, vector<1x1x1x16xf32>
    %74 = vector.shape_cast %73 : vector<1x1x1x16xf32> to vector<1x16xf32>
    %75 = vector.broadcast %74 : vector<1x16xf32> to vector<16x16xf32>
    %76 = arith.addf %72, %75 : vector<16x16xf32>
    %c0_64 = arith.constant 0 : index
    %c1_65 = arith.constant 1 : index
    %c0_66 = arith.constant 0 : index
    %c0_67 = arith.constant 0 : index
    %77 = vector.load %arg8[%c0_64, %c1_65, %c0_66, %c0_67] : memref<2x2x32x16xf32, #tpu.memory_space<vmem>>, vector<1x1x32x16xf32>
    %78 = vector.shape_cast %77 : vector<1x1x32x16xf32> to vector<32x16xf32>
    %cst_68 = arith.constant dense<0.000000e+00> : vector<16x16xf32>
    %79 = tpu.matmul %35, %78, %cst_68 {dimension_numbers = #tpu.dot_dimension_numbers<[1], [0], [0], [1], [0, 0, 1, 1], [], []>} : vector<16x32xf32>, vector<32x16xf32>, vector<16x16xf32> -> vector<16x16xf32>
    %c0_69 = arith.constant 0 : index
    %c1_70 = arith.constant 1 : index
    %c0_71 = arith.constant 0 : index
    %c0_72 = arith.constant 0 : index
    %80 = vector.load %arg11[%c0_69, %c1_70, %c0_71, %c0_72] : memref<2x2x1x16xf32, #tpu.memory_space<vmem>>, vector<1x1x1x16xf32>
    %81 = vector.shape_cast %80 : vector<1x1x1x16xf32> to vector<1x16xf32>
    %82 = vector.broadcast %81 : vector<1x16xf32> to vector<16x16xf32>
    %83 = arith.addf %79, %82 : vector<16x16xf32>
    %84 = vector.extract_strided_slice %41 {offsets = [0, 0], sizes = [1, 8], strides = [1, 1]} : vector<2x8xf32> to vector<1x8xf32>
    %85 = vector.extract_strided_slice %48 {offsets = [0, 0], sizes = [8, 16], strides = [1, 1]} : vector<16x16xf32> to vector<8x16xf32>
    %86 = vector.extract_strided_slice %62 {offsets = [0, 0], sizes = [8, 16], strides = [1, 1]} : vector<16x16xf32> to vector<8x16xf32>
    %87 = vector.extract_strided_slice %76 {offsets = [0, 0], sizes = [8, 16], strides = [1, 1]} : vector<16x16xf32> to vector<8x16xf32>
    %cst_73 = arith.constant dense<0.000000e+00> : vector<8x8xf32>
    %88 = tpu.matmul %85, %86, %cst_73 {dimension_numbers = #tpu.dot_dimension_numbers<[1], [1], [0], [0], [0, 0, 1, 0], [], []>} : vector<8x16xf32>, vector<8x16xf32>, vector<8x8xf32> -> vector<8x8xf32>
    %89 = vector.broadcast %84 : vector<1x8xf32> to vector<8x8xf32>
    %90 = arith.addf %88, %89 : vector<8x8xf32>
    %cst_74 = arith.constant dense<0xFF800000> : vector<8xf32>
    %91 = vector.multi_reduction <maximumf>, %90, %cst_74 [1] : vector<8x8xf32> to vector<8xf32>
    %92 = vector.shape_cast %91 : vector<8xf32> to vector<8x1xf32>
    %93 = vector.broadcast %92 : vector<8x1xf32> to vector<8x8xf32>
    %94 = arith.subf %90, %93 : vector<8x8xf32>
    %95 = math.exp %94 : vector<8x8xf32>
    %cst_75 = arith.constant dense<0.000000e+00> : vector<8xf32>
    %96 = vector.multi_reduction <add>, %95, %cst_75 [1] : vector<8x8xf32> to vector<8xf32>
    %97 = vector.shape_cast %96 : vector<8xf32> to vector<8x1xf32>
    %98 = vector.broadcast %97 : vector<8x1xf32> to vector<8x8xf32>
    %99 = arith.divf %95, %98 : vector<8x8xf32>
    %cst_76 = arith.constant dense<0.000000e+00> : vector<8x16xf32>
    %100 = tpu.matmul %99, %87, %cst_76 {dimension_numbers = #tpu.dot_dimension_numbers<[1], [0], [0], [1], [0, 0, 1, 1], [], []>} : vector<8x8xf32>, vector<8x16xf32>, vector<8x16xf32> -> vector<8x16xf32>
    %101 = vector.extract_strided_slice %55 {offsets = [0, 0], sizes = [8, 16], strides = [1, 1]} : vector<16x16xf32> to vector<8x16xf32>
    %102 = vector.extract_strided_slice %69 {offsets = [0, 0], sizes = [8, 16], strides = [1, 1]} : vector<16x16xf32> to vector<8x16xf32>
    %103 = vector.extract_strided_slice %83 {offsets = [0, 0], sizes = [8, 16], strides = [1, 1]} : vector<16x16xf32> to vector<8x16xf32>
    %cst_77 = arith.constant dense<0.000000e+00> : vector<8x8xf32>
    %104 = tpu.matmul %101, %102, %cst_77 {dimension_numbers = #tpu.dot_dimension_numbers<[1], [1], [0], [0], [0, 0, 1, 0], [], []>} : vector<8x16xf32>, vector<8x16xf32>, vector<8x8xf32> -> vector<8x8xf32>
    %105 = vector.broadcast %84 : vector<1x8xf32> to vector<8x8xf32>
    %106 = arith.addf %104, %105 : vector<8x8xf32>
    %cst_78 = arith.constant dense<0xFF800000> : vector<8xf32>
    %107 = vector.multi_reduction <maximumf>, %106, %cst_78 [1] : vector<8x8xf32> to vector<8xf32>
    %108 = vector.shape_cast %107 : vector<8xf32> to vector<8x1xf32>
    %109 = vector.broadcast %108 : vector<8x1xf32> to vector<8x8xf32>
    %110 = arith.subf %106, %109 : vector<8x8xf32>
    %111 = math.exp %110 : vector<8x8xf32>
    %cst_79 = arith.constant dense<0.000000e+00> : vector<8xf32>
    %112 = vector.multi_reduction <add>, %111, %cst_79 [1] : vector<8x8xf32> to vector<8xf32>
    %113 = vector.shape_cast %112 : vector<8xf32> to vector<8x1xf32>
    %114 = vector.broadcast %113 : vector<8x1xf32> to vector<8x8xf32>
    %115 = arith.divf %111, %114 : vector<8x8xf32>
    %cst_80 = arith.constant dense<0.000000e+00> : vector<8x16xf32>
    %116 = tpu.matmul %115, %103, %cst_80 {dimension_numbers = #tpu.dot_dimension_numbers<[1], [0], [0], [1], [0, 0, 1, 1], [], []>} : vector<8x8xf32>, vector<8x16xf32>, vector<8x16xf32> -> vector<8x16xf32>
    %117 = tpu.concatenate %100, %116 in 1 : vector<8x16xf32>, vector<8x16xf32> -> vector<8x32xf32>
    %118 = vector.extract_strided_slice %41 {offsets = [1, 0], sizes = [1, 8], strides = [1, 1]} : vector<2x8xf32> to vector<1x8xf32>
    %119 = vector.extract_strided_slice %48 {offsets = [8, 0], sizes = [8, 16], strides = [1, 1]} : vector<16x16xf32> to vector<8x16xf32>
    %120 = vector.extract_strided_slice %62 {offsets = [8, 0], sizes = [8, 16], strides = [1, 1]} : vector<16x16xf32> to vector<8x16xf32>
    %121 = vector.extract_strided_slice %76 {offsets = [8, 0], sizes = [8, 16], strides = [1, 1]} : vector<16x16xf32> to vector<8x16xf32>
    %cst_81 = arith.constant dense<0.000000e+00> : vector<8x8xf32>
    %122 = tpu.matmul %119, %120, %cst_81 {dimension_numbers = #tpu.dot_dimension_numbers<[1], [1], [0], [0], [0, 0, 1, 0], [], []>} : vector<8x16xf32>, vector<8x16xf32>, vector<8x8xf32> -> vector<8x8xf32>
    %123 = vector.broadcast %118 : vector<1x8xf32> to vector<8x8xf32>
    %124 = arith.addf %122, %123 : vector<8x8xf32>
    %cst_82 = arith.constant dense<0xFF800000> : vector<8xf32>
    %125 = vector.multi_reduction <maximumf>, %124, %cst_82 [1] : vector<8x8xf32> to vector<8xf32>
    %126 = vector.shape_cast %125 : vector<8xf32> to vector<8x1xf32>
    %127 = vector.broadcast %126 : vector<8x1xf32> to vector<8x8xf32>
    %128 = arith.subf %124, %127 : vector<8x8xf32>
    %129 = math.exp %128 : vector<8x8xf32>
    %cst_83 = arith.constant dense<0.000000e+00> : vector<8xf32>
    %130 = vector.multi_reduction <add>, %129, %cst_83 [1] : vector<8x8xf32> to vector<8xf32>
    %131 = vector.shape_cast %130 : vector<8xf32> to vector<8x1xf32>
    %132 = vector.broadcast %131 : vector<8x1xf32> to vector<8x8xf32>
    %133 = arith.divf %129, %132 : vector<8x8xf32>
    %cst_84 = arith.constant dense<0.000000e+00> : vector<8x16xf32>
    %134 = tpu.matmul %133, %121, %cst_84 {dimension_numbers = #tpu.dot_dimension_numbers<[1], [0], [0], [1], [0, 0, 1, 1], [], []>} : vector<8x8xf32>, vector<8x16xf32>, vector<8x16xf32> -> vector<8x16xf32>
    %135 = vector.extract_strided_slice %55 {offsets = [8, 0], sizes = [8, 16], strides = [1, 1]} : vector<16x16xf32> to vector<8x16xf32>
    %136 = vector.extract_strided_slice %69 {offsets = [8, 0], sizes = [8, 16], strides = [1, 1]} : vector<16x16xf32> to vector<8x16xf32>
    %137 = vector.extract_strided_slice %83 {offsets = [8, 0], sizes = [8, 16], strides = [1, 1]} : vector<16x16xf32> to vector<8x16xf32>
    %cst_85 = arith.constant dense<0.000000e+00> : vector<8x8xf32>
    %138 = tpu.matmul %135, %136, %cst_85 {dimension_numbers = #tpu.dot_dimension_numbers<[1], [1], [0], [0], [0, 0, 1, 0], [], []>} : vector<8x16xf32>, vector<8x16xf32>, vector<8x8xf32> -> vector<8x8xf32>
    %139 = vector.broadcast %118 : vector<1x8xf32> to vector<8x8xf32>
    %140 = arith.addf %138, %139 : vector<8x8xf32>
    %cst_86 = arith.constant dense<0xFF800000> : vector<8xf32>
    %141 = vector.multi_reduction <maximumf>, %140, %cst_86 [1] : vector<8x8xf32> to vector<8xf32>
    %142 = vector.shape_cast %141 : vector<8xf32> to vector<8x1xf32>
    %143 = vector.broadcast %142 : vector<8x1xf32> to vector<8x8xf32>
    %144 = arith.subf %140, %143 : vector<8x8xf32>
    %145 = math.exp %144 : vector<8x8xf32>
    %cst_87 = arith.constant dense<0.000000e+00> : vector<8xf32>
    %146 = vector.multi_reduction <add>, %145, %cst_87 [1] : vector<8x8xf32> to vector<8xf32>
    %147 = vector.shape_cast %146 : vector<8xf32> to vector<8x1xf32>
    %148 = vector.broadcast %147 : vector<8x1xf32> to vector<8x8xf32>
    %149 = arith.divf %145, %148 : vector<8x8xf32>
    %cst_88 = arith.constant dense<0.000000e+00> : vector<8x16xf32>
    %150 = tpu.matmul %149, %137, %cst_88 {dimension_numbers = #tpu.dot_dimension_numbers<[1], [0], [0], [1], [0, 0, 1, 1], [], []>} : vector<8x8xf32>, vector<8x16xf32>, vector<8x16xf32> -> vector<8x16xf32>
    %151 = tpu.concatenate %134, %150 in 1 : vector<8x16xf32>, vector<8x16xf32> -> vector<8x32xf32>
    %152 = tpu.concatenate %117, %151 in 0 : vector<8x32xf32>, vector<8x32xf32> -> vector<16x32xf32>
    %c0_89 = arith.constant 0 : index
    %c0_90 = arith.constant 0 : index
    %c0_91 = arith.constant 0 : index
    %153 = vector.load %arg12[%c0_89, %c0_90, %c0_91] : memref<2x32x32xf32, #tpu.memory_space<vmem>>, vector<1x32x32xf32>
    %154 = vector.shape_cast %153 : vector<1x32x32xf32> to vector<32x32xf32>
    %cst_92 = arith.constant dense<0.000000e+00> : vector<16x32xf32>
    %155 = tpu.matmul %152, %154, %cst_92 {dimension_numbers = #tpu.dot_dimension_numbers<[1], [0], [0], [1], [0, 0, 1, 1], [], []>} : vector<16x32xf32>, vector<32x32xf32>, vector<16x32xf32> -> vector<16x32xf32>
    %c0_93 = arith.constant 0 : index
    %c0_94 = arith.constant 0 : index
    %c0_95 = arith.constant 0 : index
    %156 = vector.load %arg13[%c0_93, %c0_94, %c0_95] : memref<2x1x32xf32, #tpu.memory_space<vmem>>, vector<1x1x32xf32>
    %157 = vector.shape_cast %156 : vector<1x1x32xf32> to vector<1x32xf32>
    %158 = vector.broadcast %157 : vector<1x32xf32> to vector<16x32xf32>
    %159 = arith.addf %155, %158 : vector<16x32xf32>
    %160 = arith.addf %159, %35 : vector<16x32xf32>
    %c0_96 = arith.constant 0 : index
    %c0_97 = arith.constant 0 : index
    %c0_98 = arith.constant 0 : index
    %161 = vector.load %arg18[%c0_96, %c0_97, %c0_98] : memref<2x1x32xf32, #tpu.memory_space<vmem>>, vector<1x1x32xf32>
    %162 = vector.shape_cast %161 : vector<1x1x32xf32> to vector<1x32xf32>
    %c0_99 = arith.constant 0 : index
    %c0_100 = arith.constant 0 : index
    %c0_101 = arith.constant 0 : index
    %163 = vector.load %arg19[%c0_99, %c0_100, %c0_101] : memref<2x1x32xf32, #tpu.memory_space<vmem>>, vector<1x1x32xf32>
    %164 = vector.shape_cast %163 : vector<1x1x32xf32> to vector<1x32xf32>
    %cst_102 = arith.constant dense<0.000000e+00> : vector<16xf32>
    %165 = vector.multi_reduction <add>, %160, %cst_102 [1] : vector<16x32xf32> to vector<16xf32>
    %166 = vector.shape_cast %165 : vector<16xf32> to vector<16x1xf32>
    %cst_103 = arith.constant 3.200000e+01 : f32
    %167 = vector.broadcast %cst_103 : f32 to vector<16x1xf32>
    %168 = arith.divf %166, %167 : vector<16x1xf32>
    %169 = vector.broadcast %168 : vector<16x1xf32> to vector<16x32xf32>
    %170 = arith.subf %160, %169 : vector<16x32xf32>
    %171 = arith.mulf %170, %170 : vector<16x32xf32>
    %cst_104 = arith.constant dense<0.000000e+00> : vector<16xf32>
    %172 = vector.multi_reduction <add>, %171, %cst_104 [1] : vector<16x32xf32> to vector<16xf32>
    %173 = vector.shape_cast %172 : vector<16xf32> to vector<16x1xf32>
    %cst_105 = arith.constant 3.200000e+01 : f32
    %174 = vector.broadcast %cst_105 : f32 to vector<16x1xf32>
    %175 = arith.divf %173, %174 : vector<16x1xf32>
    %176 = vector.broadcast %168 : vector<16x1xf32> to vector<16x32xf32>
    %177 = arith.subf %160, %176 : vector<16x32xf32>
    %cst_106 = arith.constant 9.99999996E-13 : f32
    %178 = vector.broadcast %cst_106 : f32 to vector<16x1xf32>
    %179 = arith.addf %175, %178 : vector<16x1xf32>
    %180 = math.rsqrt %179 : vector<16x1xf32>
    %181 = vector.broadcast %180 : vector<16x1xf32> to vector<16x32xf32>
    %182 = arith.mulf %177, %181 : vector<16x32xf32>
    %183 = vector.broadcast %162 : vector<1x32xf32> to vector<16x32xf32>
    %184 = arith.mulf %182, %183 : vector<16x32xf32>
    %185 = vector.broadcast %164 : vector<1x32xf32> to vector<16x32xf32>
    %186 = arith.addf %184, %185 : vector<16x32xf32>
    %c0_107 = arith.constant 0 : index
    %c0_108 = arith.constant 0 : index
    %c0_109 = arith.constant 0 : index
    %187 = vector.load %arg14[%c0_107, %c0_108, %c0_109] : memref<2x32x64xf32, #tpu.memory_space<vmem>>, vector<1x32x64xf32>
    %188 = vector.shape_cast %187 : vector<1x32x64xf32> to vector<32x64xf32>
    %cst_110 = arith.constant dense<0.000000e+00> : vector<16x64xf32>
    %189 = tpu.matmul %186, %188, %cst_110 {dimension_numbers = #tpu.dot_dimension_numbers<[1], [0], [0], [1], [0, 0, 1, 1], [], []>} : vector<16x32xf32>, vector<32x64xf32>, vector<16x64xf32> -> vector<16x64xf32>
    %c0_111 = arith.constant 0 : index
    %c0_112 = arith.constant 0 : index
    %c0_113 = arith.constant 0 : index
    %190 = vector.load %arg15[%c0_111, %c0_112, %c0_113] : memref<2x1x64xf32, #tpu.memory_space<vmem>>, vector<1x1x64xf32>
    %191 = vector.shape_cast %190 : vector<1x1x64xf32> to vector<1x64xf32>
    %192 = vector.broadcast %191 : vector<1x64xf32> to vector<16x64xf32>
    %193 = arith.addf %189, %192 : vector<16x64xf32>
    %194 = arith.mulf %193, %193 : vector<16x64xf32>
    %195 = arith.mulf %193, %194 : vector<16x64xf32>
    %cst_114 = arith.constant 4.471500e-02 : f32
    %196 = vector.broadcast %cst_114 : f32 to vector<16x64xf32>
    %197 = arith.mulf %196, %195 : vector<16x64xf32>
    %198 = arith.addf %193, %197 : vector<16x64xf32>
    %cst_115 = arith.constant 0.797884583 : f32
    %199 = vector.broadcast %cst_115 : f32 to vector<16x64xf32>
    %200 = arith.mulf %199, %198 : vector<16x64xf32>
    %201 = math.tanh %200 : vector<16x64xf32>
    %cst_116 = arith.constant 1.000000e+00 : f32
    %202 = vector.broadcast %cst_116 : f32 to vector<16x64xf32>
    %203 = arith.addf %202, %201 : vector<16x64xf32>
    %cst_117 = arith.constant 5.000000e-01 : f32
    %204 = vector.broadcast %cst_117 : f32 to vector<16x64xf32>
    %205 = arith.mulf %204, %203 : vector<16x64xf32>
    %206 = arith.mulf %193, %205 : vector<16x64xf32>
    %c0_118 = arith.constant 0 : index
    %c0_119 = arith.constant 0 : index
    %c0_120 = arith.constant 0 : index
    %207 = vector.load %arg16[%c0_118, %c0_119, %c0_120] : memref<2x64x32xf32, #tpu.memory_space<vmem>>, vector<1x64x32xf32>
    %208 = vector.shape_cast %207 : vector<1x64x32xf32> to vector<64x32xf32>
    %cst_121 = arith.constant dense<0.000000e+00> : vector<16x32xf32>
    %209 = tpu.matmul %206, %208, %cst_121 {dimension_numbers = #tpu.dot_dimension_numbers<[1], [0], [0], [1], [0, 0, 1, 1], [], []>} : vector<16x64xf32>, vector<64x32xf32>, vector<16x32xf32> -> vector<16x32xf32>
    %c0_122 = arith.constant 0 : index
    %c0_123 = arith.constant 0 : index
    %c0_124 = arith.constant 0 : index
    %210 = vector.load %arg17[%c0_122, %c0_123, %c0_124] : memref<2x1x32xf32, #tpu.memory_space<vmem>>, vector<1x1x32xf32>
    %211 = vector.shape_cast %210 : vector<1x1x32xf32> to vector<1x32xf32>
    %212 = vector.broadcast %211 : vector<1x32xf32> to vector<16x32xf32>
    %213 = arith.addf %209, %212 : vector<16x32xf32>
    %214 = arith.addf %213, %186 : vector<16x32xf32>
    %c0_125 = arith.constant 0 : index
    %c0_126 = arith.constant 0 : index
    %c0_127 = arith.constant 0 : index
    %215 = vector.load %arg20[%c0_125, %c0_126, %c0_127] : memref<2x1x32xf32, #tpu.memory_space<vmem>>, vector<1x1x32xf32>
    %216 = vector.shape_cast %215 : vector<1x1x32xf32> to vector<1x32xf32>
    %c0_128 = arith.constant 0 : index
    %c0_129 = arith.constant 0 : index
    %c0_130 = arith.constant 0 : index
    %217 = vector.load %arg21[%c0_128, %c0_129, %c0_130] : memref<2x1x32xf32, #tpu.memory_space<vmem>>, vector<1x1x32xf32>
    %218 = vector.shape_cast %217 : vector<1x1x32xf32> to vector<1x32xf32>
    %cst_131 = arith.constant dense<0.000000e+00> : vector<16xf32>
    %219 = vector.multi_reduction <add>, %214, %cst_131 [1] : vector<16x32xf32> to vector<16xf32>
    %220 = vector.shape_cast %219 : vector<16xf32> to vector<16x1xf32>
    %cst_132 = arith.constant 3.200000e+01 : f32
    %221 = vector.broadcast %cst_132 : f32 to vector<16x1xf32>
    %222 = arith.divf %220, %221 : vector<16x1xf32>
    %223 = vector.broadcast %222 : vector<16x1xf32> to vector<16x32xf32>
    %224 = arith.subf %214, %223 : vector<16x32xf32>
    %225 = arith.mulf %224, %224 : vector<16x32xf32>
    %cst_133 = arith.constant dense<0.000000e+00> : vector<16xf32>
    %226 = vector.multi_reduction <add>, %225, %cst_133 [1] : vector<16x32xf32> to vector<16xf32>
    %227 = vector.shape_cast %226 : vector<16xf32> to vector<16x1xf32>
    %cst_134 = arith.constant 3.200000e+01 : f32
    %228 = vector.broadcast %cst_134 : f32 to vector<16x1xf32>
    %229 = arith.divf %227, %228 : vector<16x1xf32>
    %230 = vector.broadcast %222 : vector<16x1xf32> to vector<16x32xf32>
    %231 = arith.subf %214, %230 : vector<16x32xf32>
    %cst_135 = arith.constant 9.99999996E-13 : f32
    %232 = vector.broadcast %cst_135 : f32 to vector<16x1xf32>
    %233 = arith.addf %229, %232 : vector<16x1xf32>
    %234 = math.rsqrt %233 : vector<16x1xf32>
    %235 = vector.broadcast %234 : vector<16x1xf32> to vector<16x32xf32>
    %236 = arith.mulf %231, %235 : vector<16x32xf32>
    %237 = vector.broadcast %216 : vector<1x32xf32> to vector<16x32xf32>
    %238 = arith.mulf %236, %237 : vector<16x32xf32>
    %239 = vector.broadcast %218 : vector<1x32xf32> to vector<16x32xf32>
    %240 = arith.addf %238, %239 : vector<16x32xf32>
    %c1_136 = arith.constant 1 : index
    %c0_137 = arith.constant 0 : index
    %c0_138 = arith.constant 0 : index
    %c0_139 = arith.constant 0 : index
    %241 = vector.load %arg6[%c1_136, %c0_137, %c0_138, %c0_139] : memref<2x2x32x16xf32, #tpu.memory_space<vmem>>, vector<1x1x32x16xf32>
    %242 = vector.shape_cast %241 : vector<1x1x32x16xf32> to vector<32x16xf32>
    %cst_140 = arith.constant dense<0.000000e+00> : vector<16x16xf32>
    %243 = tpu.matmul %240, %242, %cst_140 {dimension_numbers = #tpu.dot_dimension_numbers<[1], [0], [0], [1], [0, 0, 1, 1], [], []>} : vector<16x32xf32>, vector<32x16xf32>, vector<16x16xf32> -> vector<16x16xf32>
    %c1_141 = arith.constant 1 : index
    %c0_142 = arith.constant 0 : index
    %c0_143 = arith.constant 0 : index
    %c0_144 = arith.constant 0 : index
    %244 = vector.load %arg9[%c1_141, %c0_142, %c0_143, %c0_144] : memref<2x2x1x16xf32, #tpu.memory_space<vmem>>, vector<1x1x1x16xf32>
    %245 = vector.shape_cast %244 : vector<1x1x1x16xf32> to vector<1x16xf32>
    %246 = vector.broadcast %245 : vector<1x16xf32> to vector<16x16xf32>
    %247 = arith.addf %243, %246 : vector<16x16xf32>
    %c1_145 = arith.constant 1 : index
    %c1_146 = arith.constant 1 : index
    %c0_147 = arith.constant 0 : index
    %c0_148 = arith.constant 0 : index
    %248 = vector.load %arg6[%c1_145, %c1_146, %c0_147, %c0_148] : memref<2x2x32x16xf32, #tpu.memory_space<vmem>>, vector<1x1x32x16xf32>
    %249 = vector.shape_cast %248 : vector<1x1x32x16xf32> to vector<32x16xf32>
    %cst_149 = arith.constant dense<0.000000e+00> : vector<16x16xf32>
    %250 = tpu.matmul %240, %249, %cst_149 {dimension_numbers = #tpu.dot_dimension_numbers<[1], [0], [0], [1], [0, 0, 1, 1], [], []>} : vector<16x32xf32>, vector<32x16xf32>, vector<16x16xf32> -> vector<16x16xf32>
    %c1_150 = arith.constant 1 : index
    %c1_151 = arith.constant 1 : index
    %c0_152 = arith.constant 0 : index
    %c0_153 = arith.constant 0 : index
    %251 = vector.load %arg9[%c1_150, %c1_151, %c0_152, %c0_153] : memref<2x2x1x16xf32, #tpu.memory_space<vmem>>, vector<1x1x1x16xf32>
    %252 = vector.shape_cast %251 : vector<1x1x1x16xf32> to vector<1x16xf32>
    %253 = vector.broadcast %252 : vector<1x16xf32> to vector<16x16xf32>
    %254 = arith.addf %250, %253 : vector<16x16xf32>
    %c1_154 = arith.constant 1 : index
    %c0_155 = arith.constant 0 : index
    %c0_156 = arith.constant 0 : index
    %c0_157 = arith.constant 0 : index
    %255 = vector.load %arg7[%c1_154, %c0_155, %c0_156, %c0_157] : memref<2x2x32x16xf32, #tpu.memory_space<vmem>>, vector<1x1x32x16xf32>
    %256 = vector.shape_cast %255 : vector<1x1x32x16xf32> to vector<32x16xf32>
    %cst_158 = arith.constant dense<0.000000e+00> : vector<16x16xf32>
    %257 = tpu.matmul %240, %256, %cst_158 {dimension_numbers = #tpu.dot_dimension_numbers<[1], [0], [0], [1], [0, 0, 1, 1], [], []>} : vector<16x32xf32>, vector<32x16xf32>, vector<16x16xf32> -> vector<16x16xf32>
    %c1_159 = arith.constant 1 : index
    %c0_160 = arith.constant 0 : index
    %c0_161 = arith.constant 0 : index
    %c0_162 = arith.constant 0 : index
    %258 = vector.load %arg10[%c1_159, %c0_160, %c0_161, %c0_162] : memref<2x2x1x16xf32, #tpu.memory_space<vmem>>, vector<1x1x1x16xf32>
    %259 = vector.shape_cast %258 : vector<1x1x1x16xf32> to vector<1x16xf32>
    %260 = vector.broadcast %259 : vector<1x16xf32> to vector<16x16xf32>
    %261 = arith.addf %257, %260 : vector<16x16xf32>
    %c1_163 = arith.constant 1 : index
    %c1_164 = arith.constant 1 : index
    %c0_165 = arith.constant 0 : index
    %c0_166 = arith.constant 0 : index
    %262 = vector.load %arg7[%c1_163, %c1_164, %c0_165, %c0_166] : memref<2x2x32x16xf32, #tpu.memory_space<vmem>>, vector<1x1x32x16xf32>
    %263 = vector.shape_cast %262 : vector<1x1x32x16xf32> to vector<32x16xf32>
    %cst_167 = arith.constant dense<0.000000e+00> : vector<16x16xf32>
    %264 = tpu.matmul %240, %263, %cst_167 {dimension_numbers = #tpu.dot_dimension_numbers<[1], [0], [0], [1], [0, 0, 1, 1], [], []>} : vector<16x32xf32>, vector<32x16xf32>, vector<16x16xf32> -> vector<16x16xf32>
    %c1_168 = arith.constant 1 : index
    %c1_169 = arith.constant 1 : index
    %c0_170 = arith.constant 0 : index
    %c0_171 = arith.constant 0 : index
    %265 = vector.load %arg10[%c1_168, %c1_169, %c0_170, %c0_171] : memref<2x2x1x16xf32, #tpu.memory_space<vmem>>, vector<1x1x1x16xf32>
    %266 = vector.shape_cast %265 : vector<1x1x1x16xf32> to vector<1x16xf32>
    %267 = vector.broadcast %266 : vector<1x16xf32> to vector<16x16xf32>
    %268 = arith.addf %264, %267 : vector<16x16xf32>
    %c1_172 = arith.constant 1 : index
    %c0_173 = arith.constant 0 : index
    %c0_174 = arith.constant 0 : index
    %c0_175 = arith.constant 0 : index
    %269 = vector.load %arg8[%c1_172, %c0_173, %c0_174, %c0_175] : memref<2x2x32x16xf32, #tpu.memory_space<vmem>>, vector<1x1x32x16xf32>
    %270 = vector.shape_cast %269 : vector<1x1x32x16xf32> to vector<32x16xf32>
    %cst_176 = arith.constant dense<0.000000e+00> : vector<16x16xf32>
    %271 = tpu.matmul %240, %270, %cst_176 {dimension_numbers = #tpu.dot_dimension_numbers<[1], [0], [0], [1], [0, 0, 1, 1], [], []>} : vector<16x32xf32>, vector<32x16xf32>, vector<16x16xf32> -> vector<16x16xf32>
    %c1_177 = arith.constant 1 : index
    %c0_178 = arith.constant 0 : index
    %c0_179 = arith.constant 0 : index
    %c0_180 = arith.constant 0 : index
    %272 = vector.load %arg11[%c1_177, %c0_178, %c0_179, %c0_180] : memref<2x2x1x16xf32, #tpu.memory_space<vmem>>, vector<1x1x1x16xf32>
    %273 = vector.shape_cast %272 : vector<1x1x1x16xf32> to vector<1x16xf32>
    %274 = vector.broadcast %273 : vector<1x16xf32> to vector<16x16xf32>
    %275 = arith.addf %271, %274 : vector<16x16xf32>
    %c1_181 = arith.constant 1 : index
    %c1_182 = arith.constant 1 : index
    %c0_183 = arith.constant 0 : index
    %c0_184 = arith.constant 0 : index
    %276 = vector.load %arg8[%c1_181, %c1_182, %c0_183, %c0_184] : memref<2x2x32x16xf32, #tpu.memory_space<vmem>>, vector<1x1x32x16xf32>
    %277 = vector.shape_cast %276 : vector<1x1x32x16xf32> to vector<32x16xf32>
    %cst_185 = arith.constant dense<0.000000e+00> : vector<16x16xf32>
    %278 = tpu.matmul %240, %277, %cst_185 {dimension_numbers = #tpu.dot_dimension_numbers<[1], [0], [0], [1], [0, 0, 1, 1], [], []>} : vector<16x32xf32>, vector<32x16xf32>, vector<16x16xf32> -> vector<16x16xf32>
    %c1_186 = arith.constant 1 : index
    %c1_187 = arith.constant 1 : index
    %c0_188 = arith.constant 0 : index
    %c0_189 = arith.constant 0 : index
    %279 = vector.load %arg11[%c1_186, %c1_187, %c0_188, %c0_189] : memref<2x2x1x16xf32, #tpu.memory_space<vmem>>, vector<1x1x1x16xf32>
    %280 = vector.shape_cast %279 : vector<1x1x1x16xf32> to vector<1x16xf32>
    %281 = vector.broadcast %280 : vector<1x16xf32> to vector<16x16xf32>
    %282 = arith.addf %278, %281 : vector<16x16xf32>
    %283 = vector.extract_strided_slice %41 {offsets = [0, 0], sizes = [1, 8], strides = [1, 1]} : vector<2x8xf32> to vector<1x8xf32>
    %284 = vector.extract_strided_slice %247 {offsets = [0, 0], sizes = [8, 16], strides = [1, 1]} : vector<16x16xf32> to vector<8x16xf32>
    %285 = vector.extract_strided_slice %261 {offsets = [0, 0], sizes = [8, 16], strides = [1, 1]} : vector<16x16xf32> to vector<8x16xf32>
    %286 = vector.extract_strided_slice %275 {offsets = [0, 0], sizes = [8, 16], strides = [1, 1]} : vector<16x16xf32> to vector<8x16xf32>
    %cst_190 = arith.constant dense<0.000000e+00> : vector<8x8xf32>
    %287 = tpu.matmul %284, %285, %cst_190 {dimension_numbers = #tpu.dot_dimension_numbers<[1], [1], [0], [0], [0, 0, 1, 0], [], []>} : vector<8x16xf32>, vector<8x16xf32>, vector<8x8xf32> -> vector<8x8xf32>
    %288 = vector.broadcast %283 : vector<1x8xf32> to vector<8x8xf32>
    %289 = arith.addf %287, %288 : vector<8x8xf32>
    %cst_191 = arith.constant dense<0xFF800000> : vector<8xf32>
    %290 = vector.multi_reduction <maximumf>, %289, %cst_191 [1] : vector<8x8xf32> to vector<8xf32>
    %291 = vector.shape_cast %290 : vector<8xf32> to vector<8x1xf32>
    %292 = vector.broadcast %291 : vector<8x1xf32> to vector<8x8xf32>
    %293 = arith.subf %289, %292 : vector<8x8xf32>
    %294 = math.exp %293 : vector<8x8xf32>
    %cst_192 = arith.constant dense<0.000000e+00> : vector<8xf32>
    %295 = vector.multi_reduction <add>, %294, %cst_192 [1] : vector<8x8xf32> to vector<8xf32>
    %296 = vector.shape_cast %295 : vector<8xf32> to vector<8x1xf32>
    %297 = vector.broadcast %296 : vector<8x1xf32> to vector<8x8xf32>
    %298 = arith.divf %294, %297 : vector<8x8xf32>
    %cst_193 = arith.constant dense<0.000000e+00> : vector<8x16xf32>
    %299 = tpu.matmul %298, %286, %cst_193 {dimension_numbers = #tpu.dot_dimension_numbers<[1], [0], [0], [1], [0, 0, 1, 1], [], []>} : vector<8x8xf32>, vector<8x16xf32>, vector<8x16xf32> -> vector<8x16xf32>
    %300 = vector.extract_strided_slice %254 {offsets = [0, 0], sizes = [8, 16], strides = [1, 1]} : vector<16x16xf32> to vector<8x16xf32>
    %301 = vector.extract_strided_slice %268 {offsets = [0, 0], sizes = [8, 16], strides = [1, 1]} : vector<16x16xf32> to vector<8x16xf32>
    %302 = vector.extract_strided_slice %282 {offsets = [0, 0], sizes = [8, 16], strides = [1, 1]} : vector<16x16xf32> to vector<8x16xf32>
    %cst_194 = arith.constant dense<0.000000e+00> : vector<8x8xf32>
    %303 = tpu.matmul %300, %301, %cst_194 {dimension_numbers = #tpu.dot_dimension_numbers<[1], [1], [0], [0], [0, 0, 1, 0], [], []>} : vector<8x16xf32>, vector<8x16xf32>, vector<8x8xf32> -> vector<8x8xf32>
    %304 = vector.broadcast %283 : vector<1x8xf32> to vector<8x8xf32>
    %305 = arith.addf %303, %304 : vector<8x8xf32>
    %cst_195 = arith.constant dense<0xFF800000> : vector<8xf32>
    %306 = vector.multi_reduction <maximumf>, %305, %cst_195 [1] : vector<8x8xf32> to vector<8xf32>
    %307 = vector.shape_cast %306 : vector<8xf32> to vector<8x1xf32>
    %308 = vector.broadcast %307 : vector<8x1xf32> to vector<8x8xf32>
    %309 = arith.subf %305, %308 : vector<8x8xf32>
    %310 = math.exp %309 : vector<8x8xf32>
    %cst_196 = arith.constant dense<0.000000e+00> : vector<8xf32>
    %311 = vector.multi_reduction <add>, %310, %cst_196 [1] : vector<8x8xf32> to vector<8xf32>
    %312 = vector.shape_cast %311 : vector<8xf32> to vector<8x1xf32>
    %313 = vector.broadcast %312 : vector<8x1xf32> to vector<8x8xf32>
    %314 = arith.divf %310, %313 : vector<8x8xf32>
    %cst_197 = arith.constant dense<0.000000e+00> : vector<8x16xf32>
    %315 = tpu.matmul %314, %302, %cst_197 {dimension_numbers = #tpu.dot_dimension_numbers<[1], [0], [0], [1], [0, 0, 1, 1], [], []>} : vector<8x8xf32>, vector<8x16xf32>, vector<8x16xf32> -> vector<8x16xf32>
    %316 = tpu.concatenate %299, %315 in 1 : vector<8x16xf32>, vector<8x16xf32> -> vector<8x32xf32>
    %317 = vector.extract_strided_slice %41 {offsets = [1, 0], sizes = [1, 8], strides = [1, 1]} : vector<2x8xf32> to vector<1x8xf32>
    %318 = vector.extract_strided_slice %247 {offsets = [8, 0], sizes = [8, 16], strides = [1, 1]} : vector<16x16xf32> to vector<8x16xf32>
    %319 = vector.extract_strided_slice %261 {offsets = [8, 0], sizes = [8, 16], strides = [1, 1]} : vector<16x16xf32> to vector<8x16xf32>
    %320 = vector.extract_strided_slice %275 {offsets = [8, 0], sizes = [8, 16], strides = [1, 1]} : vector<16x16xf32> to vector<8x16xf32>
    %cst_198 = arith.constant dense<0.000000e+00> : vector<8x8xf32>
    %321 = tpu.matmul %318, %319, %cst_198 {dimension_numbers = #tpu.dot_dimension_numbers<[1], [1], [0], [0], [0, 0, 1, 0], [], []>} : vector<8x16xf32>, vector<8x16xf32>, vector<8x8xf32> -> vector<8x8xf32>
    %322 = vector.broadcast %317 : vector<1x8xf32> to vector<8x8xf32>
    %323 = arith.addf %321, %322 : vector<8x8xf32>
    %cst_199 = arith.constant dense<0xFF800000> : vector<8xf32>
    %324 = vector.multi_reduction <maximumf>, %323, %cst_199 [1] : vector<8x8xf32> to vector<8xf32>
    %325 = vector.shape_cast %324 : vector<8xf32> to vector<8x1xf32>
    %326 = vector.broadcast %325 : vector<8x1xf32> to vector<8x8xf32>
    %327 = arith.subf %323, %326 : vector<8x8xf32>
    %328 = math.exp %327 : vector<8x8xf32>
    %cst_200 = arith.constant dense<0.000000e+00> : vector<8xf32>
    %329 = vector.multi_reduction <add>, %328, %cst_200 [1] : vector<8x8xf32> to vector<8xf32>
    %330 = vector.shape_cast %329 : vector<8xf32> to vector<8x1xf32>
    %331 = vector.broadcast %330 : vector<8x1xf32> to vector<8x8xf32>
    %332 = arith.divf %328, %331 : vector<8x8xf32>
    %cst_201 = arith.constant dense<0.000000e+00> : vector<8x16xf32>
    %333 = tpu.matmul %332, %320, %cst_201 {dimension_numbers = #tpu.dot_dimension_numbers<[1], [0], [0], [1], [0, 0, 1, 1], [], []>} : vector<8x8xf32>, vector<8x16xf32>, vector<8x16xf32> -> vector<8x16xf32>
    %334 = vector.extract_strided_slice %254 {offsets = [8, 0], sizes = [8, 16], strides = [1, 1]} : vector<16x16xf32> to vector<8x16xf32>
    %335 = vector.extract_strided_slice %268 {offsets = [8, 0], sizes = [8, 16], strides = [1, 1]} : vector<16x16xf32> to vector<8x16xf32>
    %336 = vector.extract_strided_slice %282 {offsets = [8, 0], sizes = [8, 16], strides = [1, 1]} : vector<16x16xf32> to vector<8x16xf32>
    %cst_202 = arith.constant dense<0.000000e+00> : vector<8x8xf32>
    %337 = tpu.matmul %334, %335, %cst_202 {dimension_numbers = #tpu.dot_dimension_numbers<[1], [1], [0], [0], [0, 0, 1, 0], [], []>} : vector<8x16xf32>, vector<8x16xf32>, vector<8x8xf32> -> vector<8x8xf32>
    %338 = vector.broadcast %317 : vector<1x8xf32> to vector<8x8xf32>
    %339 = arith.addf %337, %338 : vector<8x8xf32>
    %cst_203 = arith.constant dense<0xFF800000> : vector<8xf32>
    %340 = vector.multi_reduction <maximumf>, %339, %cst_203 [1] : vector<8x8xf32> to vector<8xf32>
    %341 = vector.shape_cast %340 : vector<8xf32> to vector<8x1xf32>
    %342 = vector.broadcast %341 : vector<8x1xf32> to vector<8x8xf32>
    %343 = arith.subf %339, %342 : vector<8x8xf32>
    %344 = math.exp %343 : vector<8x8xf32>
    %cst_204 = arith.constant dense<0.000000e+00> : vector<8xf32>
    %345 = vector.multi_reduction <add>, %344, %cst_204 [1] : vector<8x8xf32> to vector<8xf32>
    %346 = vector.shape_cast %345 : vector<8xf32> to vector<8x1xf32>
    %347 = vector.broadcast %346 : vector<8x1xf32> to vector<8x8xf32>
    %348 = arith.divf %344, %347 : vector<8x8xf32>
    %cst_205 = arith.constant dense<0.000000e+00> : vector<8x16xf32>
    %349 = tpu.matmul %348, %336, %cst_205 {dimension_numbers = #tpu.dot_dimension_numbers<[1], [0], [0], [1], [0, 0, 1, 1], [], []>} : vector<8x8xf32>, vector<8x16xf32>, vector<8x16xf32> -> vector<8x16xf32>
    %350 = tpu.concatenate %333, %349 in 1 : vector<8x16xf32>, vector<8x16xf32> -> vector<8x32xf32>
    %351 = tpu.concatenate %316, %350 in 0 : vector<8x32xf32>, vector<8x32xf32> -> vector<16x32xf32>
    %c1_206 = arith.constant 1 : index
    %c0_207 = arith.constant 0 : index
    %c0_208 = arith.constant 0 : index
    %352 = vector.load %arg12[%c1_206, %c0_207, %c0_208] : memref<2x32x32xf32, #tpu.memory_space<vmem>>, vector<1x32x32xf32>
    %353 = vector.shape_cast %352 : vector<1x32x32xf32> to vector<32x32xf32>
    %cst_209 = arith.constant dense<0.000000e+00> : vector<16x32xf32>
    %354 = tpu.matmul %351, %353, %cst_209 {dimension_numbers = #tpu.dot_dimension_numbers<[1], [0], [0], [1], [0, 0, 1, 1], [], []>} : vector<16x32xf32>, vector<32x32xf32>, vector<16x32xf32> -> vector<16x32xf32>
    %c1_210 = arith.constant 1 : index
    %c0_211 = arith.constant 0 : index
    %c0_212 = arith.constant 0 : index
    %355 = vector.load %arg13[%c1_210, %c0_211, %c0_212] : memref<2x1x32xf32, #tpu.memory_space<vmem>>, vector<1x1x32xf32>
    %356 = vector.shape_cast %355 : vector<1x1x32xf32> to vector<1x32xf32>
    %357 = vector.broadcast %356 : vector<1x32xf32> to vector<16x32xf32>
    %358 = arith.addf %354, %357 : vector<16x32xf32>
    %359 = arith.addf %358, %240 : vector<16x32xf32>
    %c1_213 = arith.constant 1 : index
    %c0_214 = arith.constant 0 : index
    %c0_215 = arith.constant 0 : index
    %360 = vector.load %arg18[%c1_213, %c0_214, %c0_215] : memref<2x1x32xf32, #tpu.memory_space<vmem>>, vector<1x1x32xf32>
    %361 = vector.shape_cast %360 : vector<1x1x32xf32> to vector<1x32xf32>
    %c1_216 = arith.constant 1 : index
    %c0_217 = arith.constant 0 : index
    %c0_218 = arith.constant 0 : index
    %362 = vector.load %arg19[%c1_216, %c0_217, %c0_218] : memref<2x1x32xf32, #tpu.memory_space<vmem>>, vector<1x1x32xf32>
    %363 = vector.shape_cast %362 : vector<1x1x32xf32> to vector<1x32xf32>
    %cst_219 = arith.constant dense<0.000000e+00> : vector<16xf32>
    %364 = vector.multi_reduction <add>, %359, %cst_219 [1] : vector<16x32xf32> to vector<16xf32>
    %365 = vector.shape_cast %364 : vector<16xf32> to vector<16x1xf32>
    %cst_220 = arith.constant 3.200000e+01 : f32
    %366 = vector.broadcast %cst_220 : f32 to vector<16x1xf32>
    %367 = arith.divf %365, %366 : vector<16x1xf32>
    %368 = vector.broadcast %367 : vector<16x1xf32> to vector<16x32xf32>
    %369 = arith.subf %359, %368 : vector<16x32xf32>
    %370 = arith.mulf %369, %369 : vector<16x32xf32>
    %cst_221 = arith.constant dense<0.000000e+00> : vector<16xf32>
    %371 = vector.multi_reduction <add>, %370, %cst_221 [1] : vector<16x32xf32> to vector<16xf32>
    %372 = vector.shape_cast %371 : vector<16xf32> to vector<16x1xf32>
    %cst_222 = arith.constant 3.200000e+01 : f32
    %373 = vector.broadcast %cst_222 : f32 to vector<16x1xf32>
    %374 = arith.divf %372, %373 : vector<16x1xf32>
    %375 = vector.broadcast %367 : vector<16x1xf32> to vector<16x32xf32>
    %376 = arith.subf %359, %375 : vector<16x32xf32>
    %cst_223 = arith.constant 9.99999996E-13 : f32
    %377 = vector.broadcast %cst_223 : f32 to vector<16x1xf32>
    %378 = arith.addf %374, %377 : vector<16x1xf32>
    %379 = math.rsqrt %378 : vector<16x1xf32>
    %380 = vector.broadcast %379 : vector<16x1xf32> to vector<16x32xf32>
    %381 = arith.mulf %376, %380 : vector<16x32xf32>
    %382 = vector.broadcast %361 : vector<1x32xf32> to vector<16x32xf32>
    %383 = arith.mulf %381, %382 : vector<16x32xf32>
    %384 = vector.broadcast %363 : vector<1x32xf32> to vector<16x32xf32>
    %385 = arith.addf %383, %384 : vector<16x32xf32>
    %c1_224 = arith.constant 1 : index
    %c0_225 = arith.constant 0 : index
    %c0_226 = arith.constant 0 : index
    %386 = vector.load %arg14[%c1_224, %c0_225, %c0_226] : memref<2x32x64xf32, #tpu.memory_space<vmem>>, vector<1x32x64xf32>
    %387 = vector.shape_cast %386 : vector<1x32x64xf32> to vector<32x64xf32>
    %cst_227 = arith.constant dense<0.000000e+00> : vector<16x64xf32>
    %388 = tpu.matmul %385, %387, %cst_227 {dimension_numbers = #tpu.dot_dimension_numbers<[1], [0], [0], [1], [0, 0, 1, 1], [], []>} : vector<16x32xf32>, vector<32x64xf32>, vector<16x64xf32> -> vector<16x64xf32>
    %c1_228 = arith.constant 1 : index
    %c0_229 = arith.constant 0 : index
    %c0_230 = arith.constant 0 : index
    %389 = vector.load %arg15[%c1_228, %c0_229, %c0_230] : memref<2x1x64xf32, #tpu.memory_space<vmem>>, vector<1x1x64xf32>
    %390 = vector.shape_cast %389 : vector<1x1x64xf32> to vector<1x64xf32>
    %391 = vector.broadcast %390 : vector<1x64xf32> to vector<16x64xf32>
    %392 = arith.addf %388, %391 : vector<16x64xf32>
    %393 = arith.mulf %392, %392 : vector<16x64xf32>
    %394 = arith.mulf %392, %393 : vector<16x64xf32>
    %cst_231 = arith.constant 4.471500e-02 : f32
    %395 = vector.broadcast %cst_231 : f32 to vector<16x64xf32>
    %396 = arith.mulf %395, %394 : vector<16x64xf32>
    %397 = arith.addf %392, %396 : vector<16x64xf32>
    %cst_232 = arith.constant 0.797884583 : f32
    %398 = vector.broadcast %cst_232 : f32 to vector<16x64xf32>
    %399 = arith.mulf %398, %397 : vector<16x64xf32>
    %400 = math.tanh %399 : vector<16x64xf32>
    %cst_233 = arith.constant 1.000000e+00 : f32
    %401 = vector.broadcast %cst_233 : f32 to vector<16x64xf32>
    %402 = arith.addf %401, %400 : vector<16x64xf32>
    %cst_234 = arith.constant 5.000000e-01 : f32
    %403 = vector.broadcast %cst_234 : f32 to vector<16x64xf32>
    %404 = arith.mulf %403, %402 : vector<16x64xf32>
    %405 = arith.mulf %392, %404 : vector<16x64xf32>
    %c1_235 = arith.constant 1 : index
    %c0_236 = arith.constant 0 : index
    %c0_237 = arith.constant 0 : index
    %406 = vector.load %arg16[%c1_235, %c0_236, %c0_237] : memref<2x64x32xf32, #tpu.memory_space<vmem>>, vector<1x64x32xf32>
    %407 = vector.shape_cast %406 : vector<1x64x32xf32> to vector<64x32xf32>
    %cst_238 = arith.constant dense<0.000000e+00> : vector<16x32xf32>
    %408 = tpu.matmul %405, %407, %cst_238 {dimension_numbers = #tpu.dot_dimension_numbers<[1], [0], [0], [1], [0, 0, 1, 1], [], []>} : vector<16x64xf32>, vector<64x32xf32>, vector<16x32xf32> -> vector<16x32xf32>
    %c1_239 = arith.constant 1 : index
    %c0_240 = arith.constant 0 : index
    %c0_241 = arith.constant 0 : index
    %409 = vector.load %arg17[%c1_239, %c0_240, %c0_241] : memref<2x1x32xf32, #tpu.memory_space<vmem>>, vector<1x1x32xf32>
    %410 = vector.shape_cast %409 : vector<1x1x32xf32> to vector<1x32xf32>
    %411 = vector.broadcast %410 : vector<1x32xf32> to vector<16x32xf32>
    %412 = arith.addf %408, %411 : vector<16x32xf32>
    %413 = arith.addf %412, %385 : vector<16x32xf32>
    %c1_242 = arith.constant 1 : index
    %c0_243 = arith.constant 0 : index
    %c0_244 = arith.constant 0 : index
    %414 = vector.load %arg20[%c1_242, %c0_243, %c0_244] : memref<2x1x32xf32, #tpu.memory_space<vmem>>, vector<1x1x32xf32>
    %415 = vector.shape_cast %414 : vector<1x1x32xf32> to vector<1x32xf32>
    %c1_245 = arith.constant 1 : index
    %c0_246 = arith.constant 0 : index
    %c0_247 = arith.constant 0 : index
    %416 = vector.load %arg21[%c1_245, %c0_246, %c0_247] : memref<2x1x32xf32, #tpu.memory_space<vmem>>, vector<1x1x32xf32>
    %417 = vector.shape_cast %416 : vector<1x1x32xf32> to vector<1x32xf32>
    %cst_248 = arith.constant dense<0.000000e+00> : vector<16xf32>
    %418 = vector.multi_reduction <add>, %413, %cst_248 [1] : vector<16x32xf32> to vector<16xf32>
    %419 = vector.shape_cast %418 : vector<16xf32> to vector<16x1xf32>
    %cst_249 = arith.constant 3.200000e+01 : f32
    %420 = vector.broadcast %cst_249 : f32 to vector<16x1xf32>
    %421 = arith.divf %419, %420 : vector<16x1xf32>
    %422 = vector.broadcast %421 : vector<16x1xf32> to vector<16x32xf32>
    %423 = arith.subf %413, %422 : vector<16x32xf32>
    %424 = arith.mulf %423, %423 : vector<16x32xf32>
    %cst_250 = arith.constant dense<0.000000e+00> : vector<16xf32>
    %425 = vector.multi_reduction <add>, %424, %cst_250 [1] : vector<16x32xf32> to vector<16xf32>
    %426 = vector.shape_cast %425 : vector<16xf32> to vector<16x1xf32>
    %cst_251 = arith.constant 3.200000e+01 : f32
    %427 = vector.broadcast %cst_251 : f32 to vector<16x1xf32>
    %428 = arith.divf %426, %427 : vector<16x1xf32>
    %429 = vector.broadcast %421 : vector<16x1xf32> to vector<16x32xf32>
    %430 = arith.subf %413, %429 : vector<16x32xf32>
    %cst_252 = arith.constant 9.99999996E-13 : f32
    %431 = vector.broadcast %cst_252 : f32 to vector<16x1xf32>
    %432 = arith.addf %428, %431 : vector<16x1xf32>
    %433 = math.rsqrt %432 : vector<16x1xf32>
    %434 = vector.broadcast %433 : vector<16x1xf32> to vector<16x32xf32>
    %435 = arith.mulf %430, %434 : vector<16x32xf32>
    %436 = vector.broadcast %415 : vector<1x32xf32> to vector<16x32xf32>
    %437 = arith.mulf %435, %436 : vector<16x32xf32>
    %438 = vector.broadcast %417 : vector<1x32xf32> to vector<16x32xf32>
    %439 = arith.addf %437, %438 : vector<16x32xf32>
    %440 = vector.extract_strided_slice %439 {offsets = [0, 0], sizes = [1, 32], strides = [1, 1]} : vector<16x32xf32> to vector<1x32xf32>
    %441 = vector.extract_strided_slice %439 {offsets = [8, 0], sizes = [1, 32], strides = [1, 1]} : vector<16x32xf32> to vector<1x32xf32>
    %442 = tpu.concatenate %440, %441 in 0 : vector<1x32xf32>, vector<1x32xf32> -> vector<2x32xf32>
    %c0_253 = arith.constant 0 : index
    %c0_254 = arith.constant 0 : index
    %443 = vector.load %arg22[%c0_253, %c0_254] : memref<32x128xf32, #tpu.memory_space<vmem>>, vector<32x128xf32>
    %cst_255 = arith.constant dense<0.000000e+00> : vector<2x128xf32>
    %444 = tpu.matmul %442, %443, %cst_255 {dimension_numbers = #tpu.dot_dimension_numbers<[1], [0], [0], [1], [0, 0, 1, 1], [], []>} : vector<2x32xf32>, vector<32x128xf32>, vector<2x128xf32> -> vector<2x128xf32>
    %c0_256 = arith.constant 0 : index
    %c0_257 = arith.constant 0 : index
    %445 = vector.load %arg23[%c0_256, %c0_257] : memref<1x128xf32, #tpu.memory_space<vmem>>, vector<1x128xf32>
    %446 = vector.broadcast %445 : vector<1x128xf32> to vector<2x128xf32>
    %447 = arith.addf %444, %446 : vector<2x128xf32>
    %c0_258 = arith.constant 0 : index
    %c0_259 = arith.constant 0 : index
    %448 = vector.load %arg24[%c0_258, %c0_259] : memref<2x128xf32, #tpu.memory_space<vmem>>, vector<2x128xf32>
    tpu.vector_store %arg24[%c0_258, %c0_259], %447 {strides = array<i32>} : memref<2x128xf32, #tpu.memory_space<vmem>>, vector<2x128xf32>,
    return
  }
}

</mosaic_0001>

<llo_original>
// kernel: my_model_forward.1
$region0: #{my_model_forward.1}
  #allocation0 [shape = 'u32[]', space=smem, size = 0x4, offset = 0x4, fixed_abs, tag = 'smem constant byte address 0x4 - core index']
  #allocation1 [shape = 'u32[72,128]{1,0:T(1,128)}', space=vmem, size = 0x9000, scoped, tag = 'internal scratch']
  %s0 = inlined_call_operand.vmem [shape: s32[16,1], index: 0, kind: input, shape index: {}]
  %s1 = inlined_call_operand.vmem [shape: s32[2,8], index: 1, kind: input, shape index: {}]
  %s2 = inlined_call_operand.vmem [shape: f32[128,32], index: 2, kind: input, shape index: {}]
  %s3 = inlined_call_operand.vmem [shape: f32[8,32], index: 3, kind: input, shape index: {}]
  %s4 = inlined_call_operand.vmem [shape: f32[1,32], index: 4, kind: input, shape index: {}]
  %s5 = inlined_call_operand.vmem [shape: f32[1,32], index: 5, kind: input, shape index: {}]
  %s6 = inlined_call_operand.vmem [shape: f32[2,2,32,16], index: 6, kind: input, shape index: {}]
  %s7 = inlined_call_operand.vmem [shape: f32[2,2,32,16], index: 7, kind: input, shape index: {}]
  %s8 = inlined_call_operand.vmem [shape: f32[2,2,32,16], index: 8, kind: input, shape index: {}]
  %s9 = inlined_call_operand.vmem [shape: f32[2,2,1,16], index: 9, kind: input, shape index: {}]
  %s10 = inlined_call_operand.vmem [shape: f32[2,2,1,16], index: 10, kind: input, shape index: {}]
  %s11 = inlined_call_operand.vmem [shape: f32[2,2,1,16], index: 11, kind: input, shape index: {}]
  %s12 = inlined_call_operand.vmem [shape: f32[2,32,32], index: 12, kind: input, shape index: {}]
  %s13 = inlined_call_operand.vmem [shape: f32[2,1,32], index: 13, kind: input, shape index: {}]
  %s14 = inlined_call_operand.vmem [shape: f32[2,32,64], index: 14, kind: input, shape index: {}]
  %s15 = inlined_call_operand.vmem [shape: f32[2,1,64], index: 15, kind: input, shape index: {}]
  %s16 = inlined_call_operand.vmem [shape: f32[2,64,32], index: 16, kind: input, shape index: {}]
  %s17 = inlined_call_operand.vmem [shape: f32[2,1,32], index: 17, kind: input, shape index: {}]
  %s18 = inlined_call_operand.vmem [shape: f32[2,1,32], index: 18, kind: input, shape index: {}]
  %s19 = inlined_call_operand.vmem [shape: f32[2,1,32], index: 19, kind: input, shape index: {}]
  %s20 = inlined_call_operand.vmem [shape: f32[2,1,32], index: 20, kind: input, shape index: {}]
  %s21 = inlined_call_operand.vmem [shape: f32[2,1,32], index: 21, kind: input, shape index: {}]
  %s22 = inlined_call_operand.vmem [shape: f32[32,128], index: 22, kind: input, shape index: {}]
  %s23 = inlined_call_operand.vmem [shape: f32[1,128], index: 23, kind: input, shape index: {}]
  %s24 = inlined_call_operand.hbm [shape: f32[2,128], index: 24, kind: output, shape index: {}]
  %s25 = sld [smem:[#allocation0]]
  $region106: #{my_model_forward.1} parent=0
    _
  %s27 = ssub.s32 1, %s25
  %s28 = scalar_select 0, %s27, %s25
  $region1: #{my_model_forward.1} parent=0
    #allocation2 [shape = 'u8[1024]{0}', space=vmem, size = 0x400, scoped, tag = 'output window, operand 0, single buffered']
    #allocation3 [shape = 's32[1]{0}', space=sflag, size = 0x4, scoped, tag = 'scoped memory for my_model_forward.1']
    %29 = vsyncpa [#allocation3], 0
    // Predicated region
    $region2: #{my_model_forward.1} parent=1 // pred_check
      _
    $region3: #{my_model_forward.1} parent=1 // pred_check_branch
      %31 = sbr.rel (0) target = $region5
    $region4: #{my_model_forward.1} parent=1 // pred_region
      _
    $region5: #{my_model_forward.1} parent=1 // pred_fallthru
      _
    // Predicated region
    $region6: #{my_model_forward.1} parent=1 // pred_check
      _
    $region7: #{my_model_forward.1} parent=1 // pred_check_branch
      %33 = sbr.rel (0) target = $region9
    $region8: #{my_model_forward.1} parent=1 // pred_region
      _
    $region9: #{my_model_forward.1} parent=1 // pred_fallthru
      _
    // Predicated region
    $region10: #{my_model_forward.1} parent=1 // pred_check
      _
    $region11: #{my_model_forward.1} parent=1 // pred_check_branch
      %35 = sbr.rel (0) target = $region13
    $region12: #{my_model_forward.1} parent=1 // pred_region
      _
    $region13: #{my_model_forward.1} parent=1 // pred_fallthru
      _
    // Predicated region
    $region14: #{my_model_forward.1} parent=1 // pred_check
      _
    $region15: #{my_model_forward.1} parent=1 // pred_check_branch
      %37 = sbr.rel (0) target = $region17
    $region16: #{my_model_forward.1} parent=1 // pred_region
      _
    $region17: #{my_model_forward.1} parent=1 // pred_fallthru
      _
    // Predicated region
    $region18: #{my_model_forward.1} parent=1 // pred_check
      _
    $region19: #{my_model_forward.1} parent=1 // pred_check_branch
      %39 = sbr.rel (0) target = $region21
    $region20: #{my_model_forward.1} parent=1 // pred_region
      _
    $region21: #{my_model_forward.1} parent=1 // pred_fallthru
      _
    // Predicated region
    $region22: #{my_model_forward.1} parent=1 // pred_check
      _
    $region23: #{my_model_forward.1} parent=1 // pred_check_branch
      %41 = sbr.rel (0) target = $region25
    $region24: #{my_model_forward.1} parent=1 // pred_region
      _
    $region25: #{my_model_forward.1} parent=1 // pred_fallthru
      _
    // Predicated region
    $region26: #{my_model_forward.1} parent=1 // pred_check
      _
    $region27: #{my_model_forward.1} parent=1 // pred_check_branch
      %43 = sbr.rel (0) target = $region29
    $region28: #{my_model_forward.1} parent=1 // pred_region
      _
    $region29: #{my_model_forward.1} parent=1 // pred_fallthru
      _
    // Predicated region
    $region30: #{my_model_forward.1} parent=1 // pred_check
      _
    $region31: #{my_model_forward.1} parent=1 // pred_check_branch
      %45 = sbr.rel (0) target = $region33
    $region32: #{my_model_forward.1} parent=1 // pred_region
      _
    $region33: #{my_model_forward.1} parent=1 // pred_fallthru
      _
    // Predicated region
    $region34: #{my_model_forward.1} parent=1 // pred_check
      _
    $region35: #{my_model_forward.1} parent=1 // pred_check_branch
      %47 = sbr.rel (0) target = $region37
    $region36: #{my_model_forward.1} parent=1 // pred_region
      _
    $region37: #{my_model_forward.1} parent=1 // pred_fallthru
      _
    // Predicated region
    $region38: #{my_model_forward.1} parent=1 // pred_check
      _
    $region39: #{my_model_forward.1} parent=1 // pred_check_branch
      %49 = sbr.rel (0) target = $region41
    $region40: #{my_model_forward.1} parent=1 // pred_region
      _
    $region41: #{my_model_forward.1} parent=1 // pred_fallthru
      _
    // Predicated region
    $region42: #{my_model_forward.1} parent=1 // pred_check
      _
    $region43: #{my_model_forward.1} parent=1 // pred_check_branch
      %51 = sbr.rel (0) target = $region45
    $region44: #{my_model_forward.1} parent=1 // pred_region
      _
    $region45: #{my_model_forward.1} parent=1 // pred_fallthru
      _
    // Predicated region
    $region46: #{my_model_forward.1} parent=1 // pred_check
      _
    $region47: #{my_model_forward.1} parent=1 // pred_check_branch
      %53 = sbr.rel (0) target = $region49
    $region48: #{my_model_forward.1} parent=1 // pred_region
      _
    $region49: #{my_model_forward.1} parent=1 // pred_fallthru
      _
    // Predicated region
    $region50: #{my_model_forward.1} parent=1 // pred_check
      _
    $region51: #{my_model_forward.1} parent=1 // pred_check_branch
      %55 = sbr.rel (0) target = $region53
    $region52: #{my_model_forward.1} parent=1 // pred_region
      _
    $region53: #{my_model_forward.1} parent=1 // pred_fallthru
      _
    // Predicated region
    $region54: #{my_model_forward.1} parent=1 // pred_check
      _
    $region55: #{my_model_forward.1} parent=1 // pred_check_branch
      %57 = sbr.rel (0) target = $region57
    $region56: #{my_model_forward.1} parent=1 // pred_region
      _
    $region57: #{my_model_forward.1} parent=1 // pred_fallthru
      _
    // Predicated region
    $region58: #{my_model_forward.1} parent=1 // pred_check
      _
    $region59: #{my_model_forward.1} parent=1 // pred_check_branch
      %59 = sbr.rel (0) target = $region61
    $region60: #{my_model_forward.1} parent=1 // pred_region
      _
    $region61: #{my_model_forward.1} parent=1 // pred_fallthru
      _
    // Predicated region
    $region62: #{my_model_forward.1} parent=1 // pred_check
      _
    $region63: #{my_model_forward.1} parent=1 // pred_check_branch
      %61 = sbr.rel (0) target = $region65
    $region64: #{my_model_forward.1} parent=1 // pred_region
      _
    $region65: #{my_model_forward.1} parent=1 // pred_fallthru
      _
    // Predicated region
    $region66: #{my_model_forward.1} parent=1 // pred_check
      _
    $region67: #{my_model_forward.1} parent=1 // pred_check_branch
      %63 = sbr.rel (0) target = $region69
    $region68: #{my_model_forward.1} parent=1 // pred_region
      _
    $region69: #{my_model_forward.1} parent=1 // pred_fallthru
      _
    // Predicated region
    $region70: #{my_model_forward.1} parent=1 // pred_check
      _
    $region71: #{my_model_forward.1} parent=1 // pred_check_branch
      %65 = sbr.rel (0) target = $region73
    $region72: #{my_model_forward.1} parent=1 // pred_region
      _
    $region73: #{my_model_forward.1} parent=1 // pred_fallthru
      _
    // Predicated region
    $region74: #{my_model_forward.1} parent=1 // pred_check
      _
    $region75: #{my_model_forward.1} parent=1 // pred_check_branch
      %67 = sbr.rel (0) target = $region77
    $region76: #{my_model_forward.1} parent=1 // pred_region
      _
    $region77: #{my_model_forward.1} parent=1 // pred_fallthru
      _
    // Predicated region
    $region78: #{my_model_forward.1} parent=1 // pred_check
      _
    $region79: #{my_model_forward.1} parent=1 // pred_check_branch
      %69 = sbr.rel (0) target = $region81
    $region80: #{my_model_forward.1} parent=1 // pred_region
      _
    $region81: #{my_model_forward.1} parent=1 // pred_fallthru
      _
    // Predicated region
    $region82: #{my_model_forward.1} parent=1 // pred_check
      _
    $region83: #{my_model_forward.1} parent=1 // pred_check_branch
      %71 = sbr.rel (0) target = $region85
    $region84: #{my_model_forward.1} parent=1 // pred_region
      _
    $region85: #{my_model_forward.1} parent=1 // pred_fallthru
      _
    // Predicated region
    $region86: #{my_model_forward.1} parent=1 // pred_check
      _
    $region87: #{my_model_forward.1} parent=1 // pred_check_branch
      %73 = sbr.rel (0) target = $region89
    $region88: #{my_model_forward.1} parent=1 // pred_region
      _
    $region89: #{my_model_forward.1} parent=1 // pred_fallthru
      _
    // Predicated region
    $region90: #{my_model_forward.1} parent=1 // pred_check
      _
    $region91: #{my_model_forward.1} parent=1 // pred_check_branch
      %75 = sbr.rel (0) target = $region93
    $region92: #{my_model_forward.1} parent=1 // pred_region
      _
    $region93: #{my_model_forward.1} parent=1 // pred_fallthru
      _
    // Predicated region
    $region94: #{my_model_forward.1} parent=1 // pred_check
      _
    $region95: #{my_model_forward.1} parent=1 // pred_check_branch
      %77 = sbr.rel (0) target = $region97
    $region96: #{my_model_forward.1} parent=1 // pred_region
      _
    $region97: #{my_model_forward.1} parent=1 // pred_fallthru
      _
    %v78 = vlaneseq
    %v79 = vand.u32 %v78, 127
    %v80 = vld [vmem:[%s0] sm:$0xff]
    %v81 = vld [vmem:[%s0 + $0x8] sm:$0xff]
    %82 = vset.pattern.permute.xlu0 0
    %83 = vperm.xlu0 %82, %v80
    %v84 = vpop.permute.xlu0 %83
    %85 = vset.pattern.permute.xlu0 0
    %86 = vperm.xlu0 %85, %v81
    %v87 = vpop.permute.xlu0 %86
    %vm88 = vcmp.eq.s32.totalorder %v84, %v79
    %vm89 = vcmp.eq.s32.totalorder %v87, %v79
    %v90 = vsel %vm88, 1.0, 0.0
    %v91 = vsel %vm89, 1.0, 0.0
    %v92 = vld [vmem:[%s2] sm:$0xff]
    %v93 = vld [vmem:[%s2 + $0x8] sm:$0xff]
    %v94 = vld [vmem:[%s2 + $0x10] sm:$0xff]
    %v95 = vld [vmem:[%s2 + $0x18] sm:$0xff]
    %v96 = vld [vmem:[%s2 + $0x20] sm:$0xff]
    %v97 = vld [vmem:[%s2 + $0x28] sm:$0xff]
    %v98 = vld [vmem:[%s2 + $0x30] sm:$0xff]
    %v99 = vld [vmem:[%s2 + $0x38] sm:$0xff]
    %v100 = vld [vmem:[%s2 + $0x40] sm:$0xff]
    %v101 = vld [vmem:[%s2 + $0x48] sm:$0xff]
    %v102 = vld [vmem:[%s2 + $0x50] sm:$0xff]
    %v103 = vld [vmem:[%s2 + $0x58] sm:$0xff]
    %v104 = vld [vmem:[%s2 + $0x60] sm:$0xff]
    %v105 = vld [vmem:[%s2 + $0x68] sm:$0xff]
    %v106 = vld [vmem:[%s2 + $0x70] sm:$0xff]
    %v107 = vld [vmem:[%s2 + $0x78] sm:$0xff]
    %v108 = vld [vmem:[%s3] sm:$0xff]
    %109 = vmatpush.msra.mxu0 %v107
    %110 = vmatpush.msra.mxu0 %v106
    %111 = vmatpush.msra.mxu0 %v105
    %112 = vmatpush.msra.mxu0 %v104
    %113 = vmatpush.msra.mxu0 %v103
    %114 = vmatpush.msra.mxu0 %v102
    %115 = vmatpush.msra.mxu0 %v101
    %116 = vmatpush.msra.mxu0 %v100
    %117 = vmatpush.msra.mxu0 %v99
    %118 = vmatpush.msra.mxu0 %v98
    %119 = vmatpush.msra.mxu0 %v97
    %120 = vmatpush.msra.mxu0 %v96
    %121 = vmatpush.msra.mxu0 %v95
    %122 = vmatpush.msra.mxu0 %v94
    %123 = vmatpush.msra.mxu0 %v93
    %124 = vmatpush.msra.mxu0 %v92
    %125 = vmatmul.f32.gmra.mxu0 %v90
    %v126 = vpop.f32.mrf.mxu0
    %v127 = vadd.f32 %v108, %v126
    %128 = vmatmul.f32.gmra.mxu0 %v91
    %v129 = vpop.f32.mrf.mxu0
    %v130 = vadd.f32 %v108, %v129
    %131 = vdwg.mxu0
    %v132 = vld [vmem:[%s4] sm:$0x1]
    %v133 = vld [vmem:[%s5] sm:$0x1]
    %vm134 = vcmask 261120
    %v135 = vsel %vm134, %v127, 0.0
    %136 = vadd.xlane.f32.xlu0 %v135
    %v137 = vpop.xlane.xlu0 %136
    %v138 = vsel %vm134, %v130, 0.0
    %139 = vadd.xlane.f32.xlu0 %v138
    %v140 = vpop.xlane.xlu0 %139
    %v141 = vrcp.pop 32.0
    %v142 = vmul.f32 32.0, %v141
    %v143 = vsub.f32 1.0, %v142
    %v144 = vmul.f32 %v141, %v143
    %v145 = vadd.f32 %v141, %v144
    %vm146 = vweird.f32 %v141
    %v147 = vsel %vm146, %v141, %v145
    %v148 = vmul.f32 %v137, %v147
    %v149 = vmul.f32 %v140, %v147
    %v150 = vsub.f32 %v127, %v148
    %v151 = vsub.f32 %v130, %v149
    %v152 = vmul.f32 %v150, %v150
    %v153 = vmul.f32 %v151, %v151
    %v154 = vsel %vm134, %v152, 0.0
    %155 = vadd.xlane.f32.xlu0 %v154
    %v156 = vpop.xlane.xlu0 %155
    %v157 = vsel %vm134, %v153, 0.0
    %158 = vadd.xlane.f32.xlu0 %v157
    %v159 = vpop.xlane.xlu0 %158
    %v160 = vmul.f32 %v156, %v147
    %v161 = vmul.f32 %v159, %v147
    %v162 = vadd.f32 %v160, 1e-12
    %v163 = vadd.f32 %v161, 1e-12
    %v164 = vrsqrt.pop %v162
    %v165 = vmul.f32 %v164, %v162
    %v166 = vmul.f32 %v165, %v164
    %v167 = vmul.f32 0.5, %v166
    %v168 = vsub.f32 1.5, %v167
    %v169 = vmul.f32 %v164, %v168
    %vm170 = vweird.f32 %v162
    %vm171 = vweird.f32 %v164
    %vm172 = vmor %vm170, %vm171
    %v173 = vsel %vm172, %v164, %v169
    %v174 = vrsqrt.pop %v163
    %v175 = vmul.f32 %v174, %v163
    %v176 = vmul.f32 %v175, %v174
    %v177 = vmul.f32 0.5, %v176
    %v178 = vsub.f32 1.5, %v177
    %v179 = vmul.f32 %v174, %v178
    %vm180 = vweird.f32 %v163
    %vm181 = vweird.f32 %v174
    %vm182 = vmor %vm180, %vm181
    %v183 = vsel %vm182, %v174, %v179
    %v184 = vmul.f32 %v150, %v173
    %v185 = vmul.f32 %v151, %v183
    %v187 = vperm.slane %v132, 0
    %v189 = vmul.f32 %v184, %v187
    %v190 = vmul.f32 %v185, %v187
    %v192 = vperm.slane %v133, 0
    %v194 = vadd.f32 %v189, %v192
    %v195 = vadd.f32 %v190, %v192
    %v196 = vld [vmem:[%s1] sm:$0x3]
    %v197 = vcvt.s32.f32 %v196
    %v198 = vsub.f32 1.0, %v197
    %v199 = vmul.f32 %v198, -1e+09
    %v200 = vld [vmem:[%s6] sm:$0xff]
    %v201 = vld [vmem:[%s6 + $0x8] sm:$0xff]
    %v202 = vld [vmem:[%s6 + $0x10] sm:$0xff]
    %v203 = vld [vmem:[%s6 + $0x18] sm:$0xff]
    %v204 = vld [vmem:[%s9] sm:$0x1]
    %v206 = vperm.slane %v204, 0
    %v209 = vsel %vm134, %v194, 0
    %v212 = vsel %vm134, %v195, 0
    %214 = vmatpush.msra.mxu0 0.0
    %215 = vmatpush.msra.mxu0 0.0
    %216 = vmatpush.msra.mxu0 0.0
    %217 = vmatpush.msra.mxu0 0.0
    %218 = vmatpush.msra.mxu0 0.0
    %219 = vmatpush.msra.mxu0 0.0
    %220 = vmatpush.msra.mxu0 0.0
    %221 = vmatpush.msra.mxu0 0.0
    %222 = vmatpush.msra.mxu0 0.0
    %223 = vmatpush.msra.mxu0 0.0
    %224 = vmatpush.msra.mxu0 0.0
    %225 = vmatpush.msra.mxu0 0.0
    %226 = vmatpush.msra.mxu0 %v203
    %227 = vmatpush.msra.mxu0 %v202
    %228 = vmatpush.msra.mxu0 %v201
    %229 = vmatpush.msra.mxu0 %v200
    %230 = vmatmul.f32.gmra.mxu0 %v209
    %v231 = vpop.f32.mrf.mxu0
    %v232 = vadd.f32 %v206, %v231
    %233 = vmatmul.f32.gmra.mxu0 %v212
    %v234 = vpop.f32.mrf.mxu0
    %v235 = vadd.f32 %v206, %v234
    %236 = vdwg.mxu0
    %s237 = scalar_lea.vmem %s6, 32
    %v238 = vld [vmem:[%s237] sm:$0xff]
    %v239 = vld [vmem:[%s237 + $0x8] sm:$0xff]
    %v240 = vld [vmem:[%s237 + $0x10] sm:$0xff]
    %v241 = vld [vmem:[%s237 + $0x18] sm:$0xff]
    %s242 = scalar_lea.vmem %s9, 1
    %v243 = vld [vmem:[%s242] sm:$0x1]
    %v245 = vperm.slane %v243, 0
    %247 = vmatpush.msra.mxu0 0.0
    %248 = vmatpush.msra.mxu0 0.0
    %249 = vmatpush.msra.mxu0 0.0
    %250 = vmatpush.msra.mxu0 0.0
    %251 = vmatpush.msra.mxu0 0.0
    %252 = vmatpush.msra.mxu0 0.0
    %253 = vmatpush.msra.mxu0 0.0
    %254 = vmatpush.msra.mxu0 0.0
    %255 = vmatpush.msra.mxu0 0.0
    %256 = vmatpush.msra.mxu0 0.0
    %257 = vmatpush.msra.mxu0 0.0
    %258 = vmatpush.msra.mxu0 0.0
    %259 = vmatpush.msra.mxu0 %v241
    %260 = vmatpush.msra.mxu0 %v240
    %261 = vmatpush.msra.mxu0 %v239
    %262 = vmatpush.msra.mxu0 %v238
    %263 = vmatmul.f32.gmra.mxu0 %v209
    %v264 = vpop.f32.mrf.mxu0
    %v265 = vadd.f32 %v245, %v264
    %266 = vmatmul.f32.gmra.mxu0 %v212
    %v267 = vpop.f32.mrf.mxu0
    %v268 = vadd.f32 %v245, %v267
    %269 = vdwg.mxu0
    %v270 = vld [vmem:[%s7] sm:$0xff]
    %v271 = vld [vmem:[%s7 + $0x8] sm:$0xff]
    %v272 = vld [vmem:[%s7 + $0x10] sm:$0xff]
    %v273 = vld [vmem:[%s7 + $0x18] sm:$0xff]
    %v274 = vld [vmem:[%s10] sm:$0x1]
    %v276 = vperm.slane %v274, 0
    %278 = vmatpush.msra.mxu0 0.0
    %279 = vmatpush.msra.mxu0 0.0
    %280 = vmatpush.msra.mxu0 0.0
    %281 = vmatpush.msra.mxu0 0.0
    %282 = vmatpush.msra.mxu0 0.0
    %283 = vmatpush.msra.mxu0 0.0
    %284 = vmatpush.msra.mxu0 0.0
    %285 = vmatpush.msra.mxu0 0.0
    %286 = vmatpush.msra.mxu0 0.0
    %287 = vmatpush.msra.mxu0 0.0
    %288 = vmatpush.msra.mxu0 0.0
    %289 = vmatpush.msra.mxu0 0.0
    %290 = vmatpush.msra.mxu0 %v273
    %291 = vmatpush.msra.mxu0 %v272
    %292 = vmatpush.msra.mxu0 %v271
    %293 = vmatpush.msra.mxu0 %v270
    %294 = vmatmul.f32.gmra.mxu0 %v209
    %v295 = vpop.f32.mrf.mxu0
    %v296 = vadd.f32 %v276, %v295
    %297 = vmatmul.f32.gmra.mxu0 %v212
    %v298 = vpop.f32.mrf.mxu0
    %v299 = vadd.f32 %v276, %v298
    %300 = vdwg.mxu0
    %s301 = scalar_lea.vmem %s7, 32
    %v302 = vld [vmem:[%s301] sm:$0xff]
    %v303 = vld [vmem:[%s301 + $0x8] sm:$0xff]
    %v304 = vld [vmem:[%s301 + $0x10] sm:$0xff]
    %v305 = vld [vmem:[%s301 + $0x18] sm:$0xff]
    %s306 = scalar_lea.vmem %s10, 1
    %v307 = vld [vmem:[%s306] sm:$0x1]
    %v309 = vperm.slane %v307, 0
    %311 = vmatpush.msra.mxu0 0.0
    %312 = vmatpush.msra.mxu0 0.0
    %313 = vmatpush.msra.mxu0 0.0
    %314 = vmatpush.msra.mxu0 0.0
    %315 = vmatpush.msra.mxu0 0.0
    %316 = vmatpush.msra.mxu0 0.0
    %317 = vmatpush.msra.mxu0 0.0
    %318 = vmatpush.msra.mxu0 0.0
    %319 = vmatpush.msra.mxu0 0.0
    %320 = vmatpush.msra.mxu0 0.0
    %321 = vmatpush.msra.mxu0 0.0
    %322 = vmatpush.msra.mxu0 0.0
    %323 = vmatpush.msra.mxu0 %v305
    %324 = vmatpush.msra.mxu0 %v304
    %325 = vmatpush.msra.mxu0 %v303
    %326 = vmatpush.msra.mxu0 %v302
    %327 = vmatmul.f32.gmra.mxu0 %v209
    %v328 = vpop.f32.mrf.mxu0
    %v329 = vadd.f32 %v309, %v328
    %330 = vmatmul.f32.gmra.mxu0 %v212
    %v331 = vpop.f32.mrf.mxu0
    %v332 = vadd.f32 %v309, %v331
    %333 = vdwg.mxu0
    %v334 = vld [vmem:[%s8] sm:$0xff]
    %v335 = vld [vmem:[%s8 + $0x8] sm:$0xff]
    %v336 = vld [vmem:[%s8 + $0x10] sm:$0xff]
    %v337 = vld [vmem:[%s8 + $0x18] sm:$0xff]
    %v338 = vld [vmem:[%s11] sm:$0x1]
    %v340 = vperm.slane %v338, 0
    %342 = vmatpush.msra.mxu0 0.0
    %343 = vmatpush.msra.mxu0 0.0
    %344 = vmatpush.msra.mxu0 0.0
    %345 = vmatpush.msra.mxu0 0.0
    %346 = vmatpush.msra.mxu0 0.0
    %347 = vmatpush.msra.mxu0 0.0
    %348 = vmatpush.msra.mxu0 0.0
    %349 = vmatpush.msra.mxu0 0.0
    %350 = vmatpush.msra.mxu0 0.0
    %351 = vmatpush.msra.mxu0 0.0
    %352 = vmatpush.msra.mxu0 0.0
    %353 = vmatpush.msra.mxu0 0.0
    %354 = vmatpush.msra.mxu0 %v337
    %355 = vmatpush.msra.mxu0 %v336
    %356 = vmatpush.msra.mxu0 %v335
    %357 = vmatpush.msra.mxu0 %v334
    %358 = vmatmul.f32.gmra.mxu0 %v209
    %v359 = vpop.f32.mrf.mxu0
    %v360 = vadd.f32 %v340, %v359
    %361 = vmatmul.f32.gmra.mxu0 %v212
    %v362 = vpop.f32.mrf.mxu0
    %v363 = vadd.f32 %v340, %v362
    %364 = vdwg.mxu0
    %s365 = scalar_lea.vmem %s8, 32
    %v366 = vld [vmem:[%s365] sm:$0xff]
    %v367 = vld [vmem:[%s365 + $0x8] sm:$0xff]
    %v368 = vld [vmem:[%s365 + $0x10] sm:$0xff]
    %v369 = vld [vmem:[%s365 + $0x18] sm:$0xff]
    %s370 = scalar_lea.vmem %s11, 1
    %v371 = vld [vmem:[%s370] sm:$0x1]
    %v373 = vperm.slane %v371, 0
    %375 = vmatpush.msra.mxu0 0.0
    %376 = vmatpush.msra.mxu0 0.0
    %377 = vmatpush.msra.mxu0 0.0
    %378 = vmatpush.msra.mxu0 0.0
    %379 = vmatpush.msra.mxu0 0.0
    %380 = vmatpush.msra.mxu0 0.0
    %381 = vmatpush.msra.mxu0 0.0
    %382 = vmatpush.msra.mxu0 0.0
    %383 = vmatpush.msra.mxu0 0.0
    %384 = vmatpush.msra.mxu0 0.0
    %385 = vmatpush.msra.mxu0 0.0
    %386 = vmatpush.msra.mxu0 0.0
    %387 = vmatpush.msra.mxu0 %v369
    %388 = vmatpush.msra.mxu0 %v368
    %389 = vmatpush.msra.mxu0 %v367
    %390 = vmatpush.msra.mxu0 %v366
    %391 = vmatmul.f32.gmra.mxu0 %v209
    %v392 = vpop.f32.mrf.mxu0
    %v393 = vadd.f32 %v373, %v392
    %394 = vmatmul.f32.gmra.mxu0 %v212
    %v395 = vpop.f32.mrf.mxu0
    %v396 = vadd.f32 %v373, %v395
    %397 = vdwg.mxu0
    %v398 = vperm.slane %v199, 0
    %vm399 = vcmask 130048
    %v401 = vsel %vm399, %v232, 0
    %v404 = vsel %vm399, %v296, 0
    %406 = vmatpush.xpose.msra.mxu0 0.0
    %407 = vmatpush.xpose.msra.mxu0 0.0
    %408 = vmatpush.xpose.msra.mxu0 0.0
    %409 = vmatpush.xpose.msra.mxu0 0.0
    %410 = vmatpush.xpose.msra.mxu0 0.0
    %411 = vmatpush.xpose.msra.mxu0 0.0
    %412 = vmatpush.xpose.msra.mxu0 0.0
    %413 = vmatpush.xpose.msra.mxu0 0.0
    %414 = vmatpush.xpose.msra.mxu0 0.0
    %415 = vmatpush.xpose.msra.mxu0 0.0
    %416 = vmatpush.xpose.msra.mxu0 0.0
    %417 = vmatpush.xpose.msra.mxu0 0.0
    %418 = vmatpush.xpose.msra.mxu0 0.0
    %419 = vmatpush.xpose.msra.mxu0 0.0
    %420 = vmatpush.xpose.msra.mxu0 0.0
    %421 = vmatpush.xpose.msra.mxu0 %v404
    %422 = vmatmul.f32.gmra.mxu0 %v401
    %v423 = vpop.f32.mrf.mxu0
    %v424 = vadd.f32 %v398, %v423
    %425 = vdwg.mxu0
    %vm426 = vcmask 64512
    %v427 = vsel %vm426, %v424, -inf
    %428 = vmax.xlane.f32.xlu0 %v427
    %v429 = vpop.xlane.xlu0 %428
    %v430 = vsub.f32 %v424, %v429
    %v431 = vmul.f32 %v430, 1.442695
    %v432 = vpow.pop %v431
    %v433 = vsel %vm426, %v432, 0.0
    %434 = vadd.xlane.f32.xlu0 %v433
    %v435 = vpop.xlane.xlu0 %434
    %v436 = vrcp.pop %v435
    %v437 = vmul.f32 %v435, %v436
    %v438 = vsub.f32 1.0, %v437
    %v439 = vmul.f32 %v436, %v438
    %v440 = vadd.f32 %v436, %v439
    %vm441 = vweird.f32 %v435
    %vm442 = vweird.f32 %v436
    %vm443 = vmor %vm441, %vm442
    %v444 = vsel %vm443, %v436, %v440
    %v445 = vand.u32 2147483647, %v435
    %vm446 = vcmp.eq.f32.partialorder %v445, 8.507059e+37
    %v447 = vand.u32 %v435, 2147483648
    %v448 = vor.u32 1.1754944e-38, %v447
    %v449 = vsel %vm446, %v448, %v444
    %v450 = vmul.f32 %v432, %v449
    %v452 = vsel %vm426, %v450, 0
    %454 = vmatpush.msra.mxu0 0.0
    %455 = vmatpush.msra.mxu0 0.0
    %456 = vmatpush.msra.mxu0 0.0
    %457 = vmatpush.msra.mxu0 0.0
    %458 = vmatpush.msra.mxu0 0.0
    %459 = vmatpush.msra.mxu0 0.0
    %460 = vmatpush.msra.mxu0 0.0
    %461 = vmatpush.msra.mxu0 0.0
    %462 = vmatpush.msra.mxu0 0.0
    %463 = vmatpush.msra.mxu0 0.0
    %464 = vmatpush.msra.mxu0 0.0
    %465 = vmatpush.msra.mxu0 0.0
    %466 = vmatpush.msra.mxu0 0.0
    %467 = vmatpush.msra.mxu0 0.0
    %468 = vmatpush.msra.mxu0 0.0
    %469 = vmatpush.msra.mxu0 %v360
    %470 = vmatmul.f32.gmra.mxu0 %v452
    %v471 = vpop.f32.mrf.mxu0
    %v472 = vadd.f32 0.0, %v471
    %473 = vdwg.mxu0
    %v475 = vsel %vm399, %v265, 0
    %v478 = vsel %vm399, %v329, 0
    %480 = vmatpush.xpose.msra.mxu0 0.0
    %481 = vmatpush.xpose.msra.mxu0 0.0
    %482 = vmatpush.xpose.msra.mxu0 0.0
    %483 = vmatpush.xpose.msra.mxu0 0.0
    %484 = vmatpush.xpose.msra.mxu0 0.0
    %485 = vmatpush.xpose.msra.mxu0 0.0
    %486 = vmatpush.xpose.msra.mxu0 0.0
    %487 = vmatpush.xpose.msra.mxu0 0.0
    %488 = vmatpush.xpose.msra.mxu0 0.0
    %489 = vmatpush.xpose.msra.mxu0 0.0
    %490 = vmatpush.xpose.msra.mxu0 0.0
    %491 = vmatpush.xpose.msra.mxu0 0.0
    %492 = vmatpush.xpose.msra.mxu0 0.0
    %493 = vmatpush.xpose.msra.mxu0 0.0
    %494 = vmatpush.xpose.msra.mxu0 0.0
    %495 = vmatpush.xpose.msra.mxu0 %v478
    %496 = vmatmul.f32.gmra.mxu0 %v475
    %v497 = vpop.f32.mrf.mxu0
    %v498 = vadd.f32 %v398, %v497
    %499 = vdwg.mxu0
    %v500 = vsel %vm426, %v498, -inf
    %501 = vmax.xlane.f32.xlu0 %v500
    %v502 = vpop.xlane.xlu0 %501
    %v503 = vsub.f32 %v498, %v502
    %v504 = vmul.f32 %v503, 1.442695
    %v505 = vpow.pop %v504
    %v506 = vsel %vm426, %v505, 0.0
    %507 = vadd.xlane.f32.xlu0 %v506
    %v508 = vpop.xlane.xlu0 %507
    %v509 = vrcp.pop %v508
    %v510 = vmul.f32 %v508, %v509
    %v511 = vsub.f32 1.0, %v510
    %v512 = vmul.f32 %v509, %v511
    %v513 = vadd.f32 %v509, %v512
    %vm514 = vweird.f32 %v508
    %vm515 = vweird.f32 %v509
    %vm516 = vmor %vm514, %vm515
    %v517 = vsel %vm516, %v509, %v513
    %v518 = vand.u32 2147483647, %v508
    %vm519 = vcmp.eq.f32.partialorder %v518, 8.507059e+37
    %v520 = vand.u32 %v508, 2147483648
    %v521 = vor.u32 1.1754944e-38, %v520
    %v522 = vsel %vm519, %v521, %v517
    %v523 = vmul.f32 %v505, %v522
    %v525 = vsel %vm426, %v523, 0
    %527 = vmatpush.msra.mxu0 0.0
    %528 = vmatpush.msra.mxu0 0.0
    %529 = vmatpush.msra.mxu0 0.0
    %530 = vmatpush.msra.mxu0 0.0
    %531 = vmatpush.msra.mxu0 0.0
    %532 = vmatpush.msra.mxu0 0.0
    %533 = vmatpush.msra.mxu0 0.0
    %534 = vmatpush.msra.mxu0 0.0
    %535 = vmatpush.msra.mxu0 0.0
    %536 = vmatpush.msra.mxu0 0.0
    %537 = vmatpush.msra.mxu0 0.0
    %538 = vmatpush.msra.mxu0 0.0
    %539 = vmatpush.msra.mxu0 0.0
    %540 = vmatpush.msra.mxu0 0.0
    %541 = vmatpush.msra.mxu0 0.0
    %542 = vmatpush.msra.mxu0 %v393
    %543 = vmatmul.f32.gmra.mxu0 %v525
    %v544 = vpop.f32.mrf.mxu0
    %v545 = vadd.f32 0.0, %v544
    %546 = vdwg.mxu0
    %548 = vrot.lane.b32.xlu0 %v545, 16
    %v549 = vpop.permute.xlu0 %548
    %v551 = vsel %vm399, %v472, %v549
    %v552 = vperm.slane %v199, 1
    %v554 = vsel %vm399, %v235, 0
    %v557 = vsel %vm399, %v299, 0
    %559 = vmatpush.xpose.msra.mxu0 0.0
    %560 = vmatpush.xpose.msra.mxu0 0.0
    %561 = vmatpush.xpose.msra.mxu0 0.0
    %562 = vmatpush.xpose.msra.mxu0 0.0
    %563 = vmatpush.xpose.msra.mxu0 0.0
    %564 = vmatpush.xpose.msra.mxu0 0.0
    %565 = vmatpush.xpose.msra.mxu0 0.0
    %566 = vmatpush.xpose.msra.mxu0 0.0
    %567 = vmatpush.xpose.msra.mxu0 0.0
    %568 = vmatpush.xpose.msra.mxu0 0.0
    %569 = vmatpush.xpose.msra.mxu0 0.0
    %570 = vmatpush.xpose.msra.mxu0 0.0
    %571 = vmatpush.xpose.msra.mxu0 0.0
    %572 = vmatpush.xpose.msra.mxu0 0.0
    %573 = vmatpush.xpose.msra.mxu0 0.0
    %574 = vmatpush.xpose.msra.mxu0 %v557
    %575 = vmatmul.f32.gmra.mxu0 %v554
    %v576 = vpop.f32.mrf.mxu0
    %v577 = vadd.f32 %v552, %v576
    %578 = vdwg.mxu0
    %v579 = vsel %vm426, %v577, -inf
    %580 = vmax.xlane.f32.xlu0 %v579
    %v581 = vpop.xlane.xlu0 %580
    %v582 = vsub.f32 %v577, %v581
    %v583 = vmul.f32 %v582, 1.442695
    %v584 = vpow.pop %v583
    %v585 = vsel %vm426, %v584, 0.0
    %586 = vadd.xlane.f32.xlu0 %v585
    %v587 = vpop.xlane.xlu0 %586
    %v588 = vrcp.pop %v587
    %v589 = vmul.f32 %v587, %v588
    %v590 = vsub.f32 1.0, %v589
    %v591 = vmul.f32 %v588, %v590
    %v592 = vadd.f32 %v588, %v591
    %vm593 = vweird.f32 %v587
    %vm594 = vweird.f32 %v588
    %vm595 = vmor %vm593, %vm594
    %v596 = vsel %vm595, %v588, %v592
    %v597 = vand.u32 2147483647, %v587
    %vm598 = vcmp.eq.f32.partialorder %v597, 8.507059e+37
    %v599 = vand.u32 %v587, 2147483648
    %v600 = vor.u32 1.1754944e-38, %v599
    %v601 = vsel %vm598, %v600, %v596
    %v602 = vmul.f32 %v584, %v601
    %v604 = vsel %vm426, %v602, 0
    %606 = vmatpush.msra.mxu0 0.0
    %607 = vmatpush.msra.mxu0 0.0
    %608 = vmatpush.msra.mxu0 0.0
    %609 = vmatpush.msra.mxu0 0.0
    %610 = vmatpush.msra.mxu0 0.0
    %611 = vmatpush.msra.mxu0 0.0
    %612 = vmatpush.msra.mxu0 0.0
    %613 = vmatpush.msra.mxu0 0.0
    %614 = vmatpush.msra.mxu0 0.0
    %615 = vmatpush.msra.mxu0 0.0
    %616 = vmatpush.msra.mxu0 0.0
    %617 = vmatpush.msra.mxu0 0.0
    %618 = vmatpush.msra.mxu0 0.0
    %619 = vmatpush.msra.mxu0 0.0
    %620 = vmatpush.msra.mxu0 0.0
    %621 = vmatpush.msra.mxu0 %v363
    %622 = vmatmul.f32.gmra.mxu0 %v604
    %v623 = vpop.f32.mrf.mxu0
    %v624 = vadd.f32 0.0, %v623
    %625 = vdwg.mxu0
    %v627 = vsel %vm399, %v268, 0
    %v630 = vsel %vm399, %v332, 0
    %632 = vmatpush.xpose.msra.mxu0 0.0
    %633 = vmatpush.xpose.msra.mxu0 0.0
    %634 = vmatpush.xpose.msra.mxu0 0.0
    %635 = vmatpush.xpose.msra.mxu0 0.0
    %636 = vmatpush.xpose.msra.mxu0 0.0
    %637 = vmatpush.xpose.msra.mxu0 0.0
    %638 = vmatpush.xpose.msra.mxu0 0.0
    %639 = vmatpush.xpose.msra.mxu0 0.0
    %640 = vmatpush.xpose.msra.mxu0 0.0
    %641 = vmatpush.xpose.msra.mxu0 0.0
    %642 = vmatpush.xpose.msra.mxu0 0.0
    %643 = vmatpush.xpose.msra.mxu0 0.0
    %644 = vmatpush.xpose.msra.mxu0 0.0
    %645 = vmatpush.xpose.msra.mxu0 0.0
    %646 = vmatpush.xpose.msra.mxu0 0.0
    %647 = vmatpush.xpose.msra.mxu0 %v630
    %648 = vmatmul.f32.gmra.mxu0 %v627
    %v649 = vpop.f32.mrf.mxu0
    %v650 = vadd.f32 %v552, %v649
    %651 = vdwg.mxu0
    %v652 = vsel %vm426, %v650, -inf
    %653 = vmax.xlane.f32.xlu0 %v652
    %v654 = vpop.xlane.xlu0 %653
    %v655 = vsub.f32 %v650, %v654
    %v656 = vmul.f32 %v655, 1.442695
    %v657 = vpow.pop %v656
    %v658 = vsel %vm426, %v657, 0.0
    %659 = vadd.xlane.f32.xlu0 %v658
    %v660 = vpop.xlane.xlu0 %659
    %v661 = vrcp.pop %v660
    %v662 = vmul.f32 %v660, %v661
    %v663 = vsub.f32 1.0, %v662
    %v664 = vmul.f32 %v661, %v663
    %v665 = vadd.f32 %v661, %v664
    %vm666 = vweird.f32 %v660
    %vm667 = vweird.f32 %v661
    %vm668 = vmor %vm666, %vm667
    %v669 = vsel %vm668, %v661, %v665
    %v670 = vand.u32 2147483647, %v660
    %vm671 = vcmp.eq.f32.partialorder %v670, 8.507059e+37
    %v672 = vand.u32 %v660, 2147483648
    %v673 = vor.u32 1.1754944e-38, %v672
    %v674 = vsel %vm671, %v673, %v669
    %v675 = vmul.f32 %v657, %v674
    %v677 = vsel %vm426, %v675, 0
    %679 = vmatpush.msra.mxu0 0.0
    %680 = vmatpush.msra.mxu0 0.0
    %681 = vmatpush.msra.mxu0 0.0
    %682 = vmatpush.msra.mxu0 0.0
    %683 = vmatpush.msra.mxu0 0.0
    %684 = vmatpush.msra.mxu0 0.0
    %685 = vmatpush.msra.mxu0 0.0
    %686 = vmatpush.msra.mxu0 0.0
    %687 = vmatpush.msra.mxu0 0.0
    %688 = vmatpush.msra.mxu0 0.0
    %689 = vmatpush.msra.mxu0 0.0
    %690 = vmatpush.msra.mxu0 0.0
    %691 = vmatpush.msra.mxu0 0.0
    %692 = vmatpush.msra.mxu0 0.0
    %693 = vmatpush.msra.mxu0 0.0
    %694 = vmatpush.msra.mxu0 %v396
    %695 = vmatmul.f32.gmra.mxu0 %v677
    %v696 = vpop.f32.mrf.mxu0
    %v697 = vadd.f32 0.0, %v696
    %698 = vdwg.mxu0
    %700 = vrot.lane.b32.xlu0 %v697, 16
    %v701 = vpop.permute.xlu0 %700
    %v703 = vsel %vm399, %v624, %v701
    %v704 = vld [vmem:[%s12] sm:$0xff]
    %v705 = vld [vmem:[%s12 + $0x8] sm:$0xff]
    %v706 = vld [vmem:[%s12 + $0x10] sm:$0xff]
    %v707 = vld [vmem:[%s12 + $0x18] sm:$0xff]
    %v708 = vld [vmem:[%s13] sm:$0x1]
    %v710 = vperm.slane %v708, 0
    %v713 = vsel %vm134, %v551, 0
    %v716 = vsel %vm134, %v703, 0
    %718 = vmatpush.msra.mxu0 0.0
    %719 = vmatpush.msra.mxu0 0.0
    %720 = vmatpush.msra.mxu0 0.0
    %721 = vmatpush.msra.mxu0 0.0
    %722 = vmatpush.msra.mxu0 0.0
    %723 = vmatpush.msra.mxu0 0.0
    %724 = vmatpush.msra.mxu0 0.0
    %725 = vmatpush.msra.mxu0 0.0
    %726 = vmatpush.msra.mxu0 0.0
    %727 = vmatpush.msra.mxu0 0.0
    %728 = vmatpush.msra.mxu0 0.0
    %729 = vmatpush.msra.mxu0 0.0
    %730 = vmatpush.msra.mxu0 %v707
    %731 = vmatpush.msra.mxu0 %v706
    %732 = vmatpush.msra.mxu0 %v705
    %733 = vmatpush.msra.mxu0 %v704
    %734 = vmatmul.f32.gmra.mxu0 %v713
    %v735 = vpop.f32.mrf.mxu0
    %v736 = vadd.f32 %v710, %v735
    %737 = vmatmul.f32.gmra.mxu0 %v716
    %v738 = vpop.f32.mrf.mxu0
    %v739 = vadd.f32 %v710, %v738
    %740 = vdwg.mxu0
    %v741 = vadd.f32 %v736, %v194
    %v742 = vadd.f32 %v739, %v195
    %v743 = vld [vmem:[%s18] sm:$0x1]
    %v744 = vld [vmem:[%s19] sm:$0x1]
    %v745 = vsel %vm134, %v741, 0.0
    %746 = vadd.xlane.f32.xlu0 %v745
    %v747 = vpop.xlane.xlu0 %746
    %v748 = vsel %vm134, %v742, 0.0
    %749 = vadd.xlane.f32.xlu0 %v748
    %v750 = vpop.xlane.xlu0 %749
    %v751 = vmul.f32 %v747, %v147
    %v752 = vmul.f32 %v750, %v147
    %v753 = vsub.f32 %v741, %v751
    %v754 = vsub.f32 %v742, %v752
    %v755 = vmul.f32 %v753, %v753
    %v756 = vmul.f32 %v754, %v754
    %v757 = vsel %vm134, %v755, 0.0
    %758 = vadd.xlane.f32.xlu0 %v757
    %v759 = vpop.xlane.xlu0 %758
    %v760 = vsel %vm134, %v756, 0.0
    %761 = vadd.xlane.f32.xlu0 %v760
    %v762 = vpop.xlane.xlu0 %761
    %v763 = vmul.f32 %v759, %v147
    %v764 = vmul.f32 %v762, %v147
    %v765 = vadd.f32 %v763, 1e-12
    %v766 = vadd.f32 %v764, 1e-12
    %v767 = vrsqrt.pop %v765
    %v768 = vmul.f32 %v767, %v765
    %v769 = vmul.f32 %v768, %v767
    %v770 = vmul.f32 0.5, %v769
    %v771 = vsub.f32 1.5, %v770
    %v772 = vmul.f32 %v767, %v771
    %vm773 = vweird.f32 %v765
    %vm774 = vweird.f32 %v767
    %vm775 = vmor %vm773, %vm774
    %v776 = vsel %vm775, %v767, %v772
    %v777 = vrsqrt.pop %v766
    %v778 = vmul.f32 %v777, %v766
    %v779 = vmul.f32 %v778, %v777
    %v780 = vmul.f32 0.5, %v779
    %v781 = vsub.f32 1.5, %v780
    %v782 = vmul.f32 %v777, %v781
    %vm783 = vweird.f32 %v766
    %vm784 = vweird.f32 %v777
    %vm785 = vmor %vm783, %vm784
    %v786 = vsel %vm785, %v777, %v782
    %v787 = vmul.f32 %v753, %v776
    %v788 = vmul.f32 %v754, %v786
    %v790 = vperm.slane %v743, 0
    %v792 = vmul.f32 %v787, %v790
    %v793 = vmul.f32 %v788, %v790
    %v795 = vperm.slane %v744, 0
    %v797 = vadd.f32 %v792, %v795
    %v798 = vadd.f32 %v793, %v795
    %v799 = vld [vmem:[%s14] sm:$0xff]
    %v800 = vld [vmem:[%s14 + $0x8] sm:$0xff]
    %v801 = vld [vmem:[%s14 + $0x10] sm:$0xff]
    %v802 = vld [vmem:[%s14 + $0x18] sm:$0xff]
    %v803 = vld [vmem:[%s15] sm:$0x1]
    %v805 = vperm.slane %v803, 0
    %v808 = vsel %vm134, %v797, 0
    %v811 = vsel %vm134, %v798, 0
    %813 = vmatpush.msra.mxu0 0.0
    %814 = vmatpush.msra.mxu0 0.0
    %815 = vmatpush.msra.mxu0 0.0
    %816 = vmatpush.msra.mxu0 0.0
    %817 = vmatpush.msra.mxu0 0.0
    %818 = vmatpush.msra.mxu0 0.0
    %819 = vmatpush.msra.mxu0 0.0
    %820 = vmatpush.msra.mxu0 0.0
    %821 = vmatpush.msra.mxu0 0.0
    %822 = vmatpush.msra.mxu0 0.0
    %823 = vmatpush.msra.mxu0 0.0
    %824 = vmatpush.msra.mxu0 0.0
    %825 = vmatpush.msra.mxu0 %v802
    %826 = vmatpush.msra.mxu0 %v801
    %827 = vmatpush.msra.mxu0 %v800
    %828 = vmatpush.msra.mxu0 %v799
    %829 = vmatmul.f32.gmra.mxu0 %v808
    %v830 = vpop.f32.mrf.mxu0
    %v831 = vadd.f32 %v805, %v830
    %832 = vmatmul.f32.gmra.mxu0 %v811
    %v833 = vpop.f32.mrf.mxu0
    %v834 = vadd.f32 %v805, %v833
    %835 = vdwg.mxu0
    %v836 = vmul.f32 %v831, %v831
    %v837 = vmul.f32 %v834, %v834
    %v838 = vmul.f32 %v831, %v836
    %v839 = vmul.f32 %v834, %v837
    %v840 = vmul.f32 %v838, 0.044715
    %v841 = vmul.f32 %v839, 0.044715
    %v842 = vadd.f32 %v831, %v840
    %v843 = vadd.f32 %v834, %v841
    %v844 = vmul.f32 %v842, 0.7978846
    %v845 = vmul.f32 %v843, 0.7978846
    %v846 = vtanh.pop %v844
    %v847 = vtanh.pop %v845
    %v848 = vadd.f32 %v846, 1.0
    %v849 = vadd.f32 %v847, 1.0
    %v850 = vmul.f32 %v848, 0.5
    %v851 = vmul.f32 %v849, 0.5
    %v852 = vmul.f32 %v831, %v850
    %v853 = vmul.f32 %v834, %v851
    %v854 = vld [vmem:[%s16] sm:$0xff]
    %v855 = vld [vmem:[%s16 + $0x8] sm:$0xff]
    %v856 = vld [vmem:[%s16 + $0x10] sm:$0xff]
    %v857 = vld [vmem:[%s16 + $0x18] sm:$0xff]
    %v858 = vld [vmem:[%s16 + $0x20] sm:$0xff]
    %v859 = vld [vmem:[%s16 + $0x28] sm:$0xff]
    %v860 = vld [vmem:[%s16 + $0x30] sm:$0xff]
    %v861 = vld [vmem:[%s16 + $0x38] sm:$0xff]
    %v862 = vld [vmem:[%s17] sm:$0x1]
    %v864 = vperm.slane %v862, 0
    %vm866 = vcmask 523264
    %v868 = vsel %vm866, %v852, 0
    %v871 = vsel %vm866, %v853, 0
    %873 = vmatpush.msra.mxu0 0.0
    %874 = vmatpush.msra.mxu0 0.0
    %875 = vmatpush.msra.mxu0 0.0
    %876 = vmatpush.msra.mxu0 0.0
    %877 = vmatpush.msra.mxu0 0.0
    %878 = vmatpush.msra.mxu0 0.0
    %879 = vmatpush.msra.mxu0 0.0
    %880 = vmatpush.msra.mxu0 0.0
    %881 = vmatpush.msra.mxu0 %v861
    %882 = vmatpush.msra.mxu0 %v860
    %883 = vmatpush.msra.mxu0 %v859
    %884 = vmatpush.msra.mxu0 %v858
    %885 = vmatpush.msra.mxu0 %v857
    %886 = vmatpush.msra.mxu0 %v856
    %887 = vmatpush.msra.mxu0 %v855
    %888 = vmatpush.msra.mxu0 %v854
    %889 = vmatmul.f32.gmra.mxu0 %v868
    %v890 = vpop.f32.mrf.mxu0
    %v891 = vadd.f32 %v864, %v890
    %892 = vmatmul.f32.gmra.mxu0 %v871
    %v893 = vpop.f32.mrf.mxu0
    %v894 = vadd.f32 %v864, %v893
    %895 = vdwg.mxu0
    %v896 = vadd.f32 %v891, %v797
    %v897 = vadd.f32 %v894, %v798
    %v898 = vld [vmem:[%s20] sm:$0x1]
    %v899 = vld [vmem:[%s21] sm:$0x1]
    %v900 = vsel %vm134, %v896, 0.0
    %901 = vadd.xlane.f32.xlu0 %v900
    %v902 = vpop.xlane.xlu0 %901
    %v903 = vsel %vm134, %v897, 0.0
    %904 = vadd.xlane.f32.xlu0 %v903
    %v905 = vpop.xlane.xlu0 %904
    %v906 = vmul.f32 %v902, %v147
    %v907 = vmul.f32 %v905, %v147
    %v908 = vsub.f32 %v896, %v906
    %v909 = vsub.f32 %v897, %v907
    %v910 = vmul.f32 %v908, %v908
    %v911 = vmul.f32 %v909, %v909
    %v912 = vsel %vm134, %v910, 0.0
    %913 = vadd.xlane.f32.xlu0 %v912
    %v914 = vpop.xlane.xlu0 %913
    %v915 = vsel %vm134, %v911, 0.0
    %916 = vadd.xlane.f32.xlu0 %v915
    %v917 = vpop.xlane.xlu0 %916
    %v918 = vmul.f32 %v914, %v147
    %v919 = vmul.f32 %v917, %v147
    %v920 = vadd.f32 %v918, 1e-12
    %v921 = vadd.f32 %v919, 1e-12
    %v922 = vrsqrt.pop %v920
    %v923 = vmul.f32 %v922, %v920
    %v924 = vmul.f32 %v923, %v922
    %v925 = vmul.f32 0.5, %v924
    %v926 = vsub.f32 1.5, %v925
    %v927 = vmul.f32 %v922, %v926
    %vm928 = vweird.f32 %v920
    %vm929 = vweird.f32 %v922
    %vm930 = vmor %vm928, %vm929
    %v931 = vsel %vm930, %v922, %v927
    %v932 = vrsqrt.pop %v921
    %v933 = vmul.f32 %v932, %v921
    %v934 = vmul.f32 %v933, %v932
    %v935 = vmul.f32 0.5, %v934
    %v936 = vsub.f32 1.5, %v935
    %v937 = vmul.f32 %v932, %v936
    %vm938 = vweird.f32 %v921
    %vm939 = vweird.f32 %v932
    %vm940 = vmor %vm938, %vm939
    %v941 = vsel %vm940, %v932, %v937
    %v942 = vmul.f32 %v908, %v931
    %v943 = vmul.f32 %v909, %v941
    %v945 = vperm.slane %v898, 0
    %v947 = vmul.f32 %v942, %v945
    %v948 = vmul.f32 %v943, %v945
    %v950 = vperm.slane %v899, 0
    %v952 = vadd.f32 %v947, %v950
    %v953 = vadd.f32 %v948, %v950
    %s954 = scalar_lea.vmem %s6, 64
    %v955 = vld [vmem:[%s954] sm:$0xff]
    %v956 = vld [vmem:[%s954 + $0x8] sm:$0xff]
    %v957 = vld [vmem:[%s954 + $0x10] sm:$0xff]
    %v958 = vld [vmem:[%s954 + $0x18] sm:$0xff]
    %s959 = scalar_lea.vmem %s9, 2
    %v960 = vld [vmem:[%s959] sm:$0x1]
    %v962 = vperm.slane %v960, 0
    %v965 = vsel %vm134, %v952, 0
    %v968 = vsel %vm134, %v953, 0
    %970 = vmatpush.msra.mxu0 0.0
    %971 = vmatpush.msra.mxu0 0.0
    %972 = vmatpush.msra.mxu0 0.0
    %973 = vmatpush.msra.mxu0 0.0
    %974 = vmatpush.msra.mxu0 0.0
    %975 = vmatpush.msra.mxu0 0.0
    %976 = vmatpush.msra.mxu0 0.0
    %977 = vmatpush.msra.mxu0 0.0
    %978 = vmatpush.msra.mxu0 0.0
    %979 = vmatpush.msra.mxu0 0.0
    %980 = vmatpush.msra.mxu0 0.0
    %981 = vmatpush.msra.mxu0 0.0
    %982 = vmatpush.msra.mxu0 %v958
    %983 = vmatpush.msra.mxu0 %v957
    %984 = vmatpush.msra.mxu0 %v956
    %985 = vmatpush.msra.mxu0 %v955
    %986 = vmatmul.f32.gmra.mxu0 %v965
    %v987 = vpop.f32.mrf.mxu0
    %v988 = vadd.f32 %v962, %v987
    %989 = vmatmul.f32.gmra.mxu0 %v968
    %v990 = vpop.f32.mrf.mxu0
    %v991 = vadd.f32 %v962, %v990
    %992 = vdwg.mxu0
    %s993 = scalar_lea.vmem %s6, 96
    %v994 = vld [vmem:[%s993] sm:$0xff]
    %v995 = vld [vmem:[%s993 + $0x8] sm:$0xff]
    %v996 = vld [vmem:[%s993 + $0x10] sm:$0xff]
    %v997 = vld [vmem:[%s993 + $0x18] sm:$0xff]
    %s998 = scalar_lea.vmem %s9, 3
    %v999 = vld [vmem:[%s998] sm:$0x1]
    %v1001 = vperm.slane %v999, 0
    %1003 = vmatpush.msra.mxu0 0.0
    %1004 = vmatpush.msra.mxu0 0.0
    %1005 = vmatpush.msra.mxu0 0.0
    %1006 = vmatpush.msra.mxu0 0.0
    %1007 = vmatpush.msra.mxu0 0.0
    %1008 = vmatpush.msra.mxu0 0.0
    %1009 = vmatpush.msra.mxu0 0.0
    %1010 = vmatpush.msra.mxu0 0.0
    %1011 = vmatpush.msra.mxu0 0.0
    %1012 = vmatpush.msra.mxu0 0.0
    %1013 = vmatpush.msra.mxu0 0.0
    %1014 = vmatpush.msra.mxu0 0.0
    %1015 = vmatpush.msra.mxu0 %v997
    %1016 = vmatpush.msra.mxu0 %v996
    %1017 = vmatpush.msra.mxu0 %v995
    %1018 = vmatpush.msra.mxu0 %v994
    %1019 = vmatmul.f32.gmra.mxu0 %v965
    %v1020 = vpop.f32.mrf.mxu0
    %v1021 = vadd.f32 %v1001, %v1020
    %1022 = vmatmul.f32.gmra.mxu0 %v968
    %v1023 = vpop.f32.mrf.mxu0
    %v1024 = vadd.f32 %v1001, %v1023
    %1025 = vdwg.mxu0
    %s1026 = scalar_lea.vmem %s7, 64
    %v1027 = vld [vmem:[%s1026] sm:$0xff]
    %v1028 = vld [vmem:[%s1026 + $0x8] sm:$0xff]
    %v1029 = vld [vmem:[%s1026 + $0x10] sm:$0xff]
    %v1030 = vld [vmem:[%s1026 + $0x18] sm:$0xff]
    %s1031 = scalar_lea.vmem %s10, 2
    %v1032 = vld [vmem:[%s1031] sm:$0x1]
    %v1034 = vperm.slane %v1032, 0
    %1036 = vmatpush.msra.mxu0 0.0
    %1037 = vmatpush.msra.mxu0 0.0
    %1038 = vmatpush.msra.mxu0 0.0
    %1039 = vmatpush.msra.mxu0 0.0
    %1040 = vmatpush.msra.mxu0 0.0
    %1041 = vmatpush.msra.mxu0 0.0
    %1042 = vmatpush.msra.mxu0 0.0
    %1043 = vmatpush.msra.mxu0 0.0
    %1044 = vmatpush.msra.mxu0 0.0
    %1045 = vmatpush.msra.mxu0 0.0
    %1046 = vmatpush.msra.mxu0 0.0
    %1047 = vmatpush.msra.mxu0 0.0
    %1048 = vmatpush.msra.mxu0 %v1030
    %1049 = vmatpush.msra.mxu0 %v1029
    %1050 = vmatpush.msra.mxu0 %v1028
    %1051 = vmatpush.msra.mxu0 %v1027
    %1052 = vmatmul.f32.gmra.mxu0 %v965
    %v1053 = vpop.f32.mrf.mxu0
    %v1054 = vadd.f32 %v1034, %v1053
    %1055 = vmatmul.f32.gmra.mxu0 %v968
    %v1056 = vpop.f32.mrf.mxu0
    %v1057 = vadd.f32 %v1034, %v1056
    %1058 = vdwg.mxu0
    %s1059 = scalar_lea.vmem %s7, 96
    %v1060 = vld [vmem:[%s1059] sm:$0xff]
    %v1061 = vld [vmem:[%s1059 + $0x8] sm:$0xff]
    %v1062 = vld [vmem:[%s1059 + $0x10] sm:$0xff]
    %v1063 = vld [vmem:[%s1059 + $0x18] sm:$0xff]
    %s1064 = scalar_lea.vmem %s10, 3
    %v1065 = vld [vmem:[%s1064] sm:$0x1]
    %v1067 = vperm.slane %v1065, 0
    %1069 = vmatpush.msra.mxu0 0.0
    %1070 = vmatpush.msra.mxu0 0.0
    %1071 = vmatpush.msra.mxu0 0.0
    %1072 = vmatpush.msra.mxu0 0.0
    %1073 = vmatpush.msra.mxu0 0.0
    %1074 = vmatpush.msra.mxu0 0.0
    %1075 = vmatpush.msra.mxu0 0.0
    %1076 = vmatpush.msra.mxu0 0.0
    %1077 = vmatpush.msra.mxu0 0.0
    %1078 = vmatpush.msra.mxu0 0.0
    %1079 = vmatpush.msra.mxu0 0.0
    %1080 = vmatpush.msra.mxu0 0.0
    %1081 = vmatpush.msra.mxu0 %v1063
    %1082 = vmatpush.msra.mxu0 %v1062
    %1083 = vmatpush.msra.mxu0 %v1061
    %1084 = vmatpush.msra.mxu0 %v1060
    %1085 = vmatmul.f32.gmra.mxu0 %v965
    %v1086 = vpop.f32.mrf.mxu0
    %v1087 = vadd.f32 %v1067, %v1086
    %1088 = vmatmul.f32.gmra.mxu0 %v968
    %v1089 = vpop.f32.mrf.mxu0
    %v1090 = vadd.f32 %v1067, %v1089
    %1091 = vdwg.mxu0
    %s1092 = scalar_lea.vmem %s8, 64
    %v1093 = vld [vmem:[%s1092] sm:$0xff]
    %v1094 = vld [vmem:[%s1092 + $0x8] sm:$0xff]
    %v1095 = vld [vmem:[%s1092 + $0x10] sm:$0xff]
    %v1096 = vld [vmem:[%s1092 + $0x18] sm:$0xff]
    %s1097 = scalar_lea.vmem %s11, 2
    %v1098 = vld [vmem:[%s1097] sm:$0x1]
    %v1100 = vperm.slane %v1098, 0
    %1102 = vmatpush.msra.mxu0 0.0
    %1103 = vmatpush.msra.mxu0 0.0
    %1104 = vmatpush.msra.mxu0 0.0
    %1105 = vmatpush.msra.mxu0 0.0
    %1106 = vmatpush.msra.mxu0 0.0
    %1107 = vmatpush.msra.mxu0 0.0
    %1108 = vmatpush.msra.mxu0 0.0
    %1109 = vmatpush.msra.mxu0 0.0
    %1110 = vmatpush.msra.mxu0 0.0
    %1111 = vmatpush.msra.mxu0 0.0
    %1112 = vmatpush.msra.mxu0 0.0
    %1113 = vmatpush.msra.mxu0 0.0
    %1114 = vmatpush.msra.mxu0 %v1096
    %1115 = vmatpush.msra.mxu0 %v1095
    %1116 = vmatpush.msra.mxu0 %v1094
    %1117 = vmatpush.msra.mxu0 %v1093
    %1118 = vmatmul.f32.gmra.mxu0 %v965
    %v1119 = vpop.f32.mrf.mxu0
    %v1120 = vadd.f32 %v1100, %v1119
    %1121 = vmatmul.f32.gmra.mxu0 %v968
    %v1122 = vpop.f32.mrf.mxu0
    %v1123 = vadd.f32 %v1100, %v1122
    %1124 = vdwg.mxu0
    %s1125 = scalar_lea.vmem %s8, 96
    %v1126 = vld [vmem:[%s1125] sm:$0xff]
    %v1127 = vld [vmem:[%s1125 + $0x8] sm:$0xff]
    %v1128 = vld [vmem:[%s1125 + $0x10] sm:$0xff]
    %v1129 = vld [vmem:[%s1125 + $0x18] sm:$0xff]
    %s1130 = scalar_lea.vmem %s11, 3
    %v1131 = vld [vmem:[%s1130] sm:$0x1]
    %v1133 = vperm.slane %v1131, 0
    %1135 = vmatpush.msra.mxu0 0.0
    %1136 = vmatpush.msra.mxu0 0.0
    %1137 = vmatpush.msra.mxu0 0.0
    %1138 = vmatpush.msra.mxu0 0.0
    %1139 = vmatpush.msra.mxu0 0.0
    %1140 = vmatpush.msra.mxu0 0.0
    %1141 = vmatpush.msra.mxu0 0.0
    %1142 = vmatpush.msra.mxu0 0.0
    %1143 = vmatpush.msra.mxu0 0.0
    %1144 = vmatpush.msra.mxu0 0.0
    %1145 = vmatpush.msra.mxu0 0.0
    %1146 = vmatpush.msra.mxu0 0.0
    %1147 = vmatpush.msra.mxu0 %v1129
    %1148 = vmatpush.msra.mxu0 %v1128
    %1149 = vmatpush.msra.mxu0 %v1127
    %1150 = vmatpush.msra.mxu0 %v1126
    %1151 = vmatmul.f32.gmra.mxu0 %v965
    %v1152 = vpop.f32.mrf.mxu0
    %v1153 = vadd.f32 %v1133, %v1152
    %1154 = vmatmul.f32.gmra.mxu0 %v968
    %v1155 = vpop.f32.mrf.mxu0
    %v1156 = vadd.f32 %v1133, %v1155
    %1157 = vdwg.mxu0
    %v1159 = vsel %vm399, %v988, 0
    %v1162 = vsel %vm399, %v1054, 0
    %1164 = vmatpush.xpose.msra.mxu0 0.0
    %1165 = vmatpush.xpose.msra.mxu0 0.0
    %1166 = vmatpush.xpose.msra.mxu0 0.0
    %1167 = vmatpush.xpose.msra.mxu0 0.0
    %1168 = vmatpush.xpose.msra.mxu0 0.0
    %1169 = vmatpush.xpose.msra.mxu0 0.0
    %1170 = vmatpush.xpose.msra.mxu0 0.0
    %1171 = vmatpush.xpose.msra.mxu0 0.0
    %1172 = vmatpush.xpose.msra.mxu0 0.0
    %1173 = vmatpush.xpose.msra.mxu0 0.0
    %1174 = vmatpush.xpose.msra.mxu0 0.0
    %1175 = vmatpush.xpose.msra.mxu0 0.0
    %1176 = vmatpush.xpose.msra.mxu0 0.0
    %1177 = vmatpush.xpose.msra.mxu0 0.0
    %1178 = vmatpush.xpose.msra.mxu0 0.0
    %1179 = vmatpush.xpose.msra.mxu0 %v1162
    %1180 = vmatmul.f32.gmra.mxu0 %v1159
    %v1181 = vpop.f32.mrf.mxu0
    %v1182 = vadd.f32 %v398, %v1181
    %1183 = vdwg.mxu0
    %v1184 = vsel %vm426, %v1182, -inf
    %1185 = vmax.xlane.f32.xlu0 %v1184
    %v1186 = vpop.xlane.xlu0 %1185
    %v1187 = vsub.f32 %v1182, %v1186
    %v1188 = vmul.f32 %v1187, 1.442695
    %v1189 = vpow.pop %v1188
    %v1190 = vsel %vm426, %v1189, 0.0
    %1191 = vadd.xlane.f32.xlu0 %v1190
    %v1192 = vpop.xlane.xlu0 %1191
    %v1193 = vrcp.pop %v1192
    %v1194 = vmul.f32 %v1192, %v1193
    %v1195 = vsub.f32 1.0, %v1194
    %v1196 = vmul.f32 %v1193, %v1195
    %v1197 = vadd.f32 %v1193, %v1196
    %vm1198 = vweird.f32 %v1192
    %vm1199 = vweird.f32 %v1193
    %vm1200 = vmor %vm1198, %vm1199
    %v1201 = vsel %vm1200, %v1193, %v1197
    %v1202 = vand.u32 2147483647, %v1192
    %vm1203 = vcmp.eq.f32.partialorder %v1202, 8.507059e+37
    %v1204 = vand.u32 %v1192, 2147483648
    %v1205 = vor.u32 1.1754944e-38, %v1204
    %v1206 = vsel %vm1203, %v1205, %v1201
    %v1207 = vmul.f32 %v1189, %v1206
    %v1209 = vsel %vm426, %v1207, 0
    %1211 = vmatpush.msra.mxu0 0.0
    %1212 = vmatpush.msra.mxu0 0.0
    %1213 = vmatpush.msra.mxu0 0.0
    %1214 = vmatpush.msra.mxu0 0.0
    %1215 = vmatpush.msra.mxu0 0.0
    %1216 = vmatpush.msra.mxu0 0.0
    %1217 = vmatpush.msra.mxu0 0.0
    %1218 = vmatpush.msra.mxu0 0.0
    %1219 = vmatpush.msra.mxu0 0.0
    %1220 = vmatpush.msra.mxu0 0.0
    %1221 = vmatpush.msra.mxu0 0.0
    %1222 = vmatpush.msra.mxu0 0.0
    %1223 = vmatpush.msra.mxu0 0.0
    %1224 = vmatpush.msra.mxu0 0.0
    %1225 = vmatpush.msra.mxu0 0.0
    %1226 = vmatpush.msra.mxu0 %v1120
    %1227 = vmatmul.f32.gmra.mxu0 %v1209
    %v1228 = vpop.f32.mrf.mxu0
    %v1229 = vadd.f32 0.0, %v1228
    %1230 = vdwg.mxu0
    %v1232 = vsel %vm399, %v1021, 0
    %v1235 = vsel %vm399, %v1087, 0
    %1237 = vmatpush.xpose.msra.mxu0 0.0
    %1238 = vmatpush.xpose.msra.mxu0 0.0
    %1239 = vmatpush.xpose.msra.mxu0 0.0
    %1240 = vmatpush.xpose.msra.mxu0 0.0
    %1241 = vmatpush.xpose.msra.mxu0 0.0
    %1242 = vmatpush.xpose.msra.mxu0 0.0
    %1243 = vmatpush.xpose.msra.mxu0 0.0
    %1244 = vmatpush.xpose.msra.mxu0 0.0
    %1245 = vmatpush.xpose.msra.mxu0 0.0
    %1246 = vmatpush.xpose.msra.mxu0 0.0
    %1247 = vmatpush.xpose.msra.mxu0 0.0
    %1248 = vmatpush.xpose.msra.mxu0 0.0
    %1249 = vmatpush.xpose.msra.mxu0 0.0
    %1250 = vmatpush.xpose.msra.mxu0 0.0
    %1251 = vmatpush.xpose.msra.mxu0 0.0
    %1252 = vmatpush.xpose.msra.mxu0 %v1235
    %1253 = vmatmul.f32.gmra.mxu0 %v1232
    %v1254 = vpop.f32.mrf.mxu0
    %v1255 = vadd.f32 %v398, %v1254
    %1256 = vdwg.mxu0
    %v1257 = vsel %vm426, %v1255, -inf
    %1258 = vmax.xlane.f32.xlu0 %v1257
    %v1259 = vpop.xlane.xlu0 %1258
    %v1260 = vsub.f32 %v1255, %v1259
    %v1261 = vmul.f32 %v1260, 1.442695
    %v1262 = vpow.pop %v1261
    %v1263 = vsel %vm426, %v1262, 0.0
    %1264 = vadd.xlane.f32.xlu0 %v1263
    %v1265 = vpop.xlane.xlu0 %1264
    %v1266 = vrcp.pop %v1265
    %v1267 = vmul.f32 %v1265, %v1266
    %v1268 = vsub.f32 1.0, %v1267
    %v1269 = vmul.f32 %v1266, %v1268
    %v1270 = vadd.f32 %v1266, %v1269
    %vm1271 = vweird.f32 %v1265
    %vm1272 = vweird.f32 %v1266
    %vm1273 = vmor %vm1271, %vm1272
    %v1274 = vsel %vm1273, %v1266, %v1270
    %v1275 = vand.u32 2147483647, %v1265
    %vm1276 = vcmp.eq.f32.partialorder %v1275, 8.507059e+37
    %v1277 = vand.u32 %v1265, 2147483648
    %v1278 = vor.u32 1.1754944e-38, %v1277
    %v1279 = vsel %vm1276, %v1278, %v1274
    %v1280 = vmul.f32 %v1262, %v1279
    %v1282 = vsel %vm426, %v1280, 0
    %1284 = vmatpush.msra.mxu0 0.0
    %1285 = vmatpush.msra.mxu0 0.0
    %1286 = vmatpush.msra.mxu0 0.0
    %1287 = vmatpush.msra.mxu0 0.0
    %1288 = vmatpush.msra.mxu0 0.0
    %1289 = vmatpush.msra.mxu0 0.0
    %1290 = vmatpush.msra.mxu0 0.0
    %1291 = vmatpush.msra.mxu0 0.0
    %1292 = vmatpush.msra.mxu0 0.0
    %1293 = vmatpush.msra.mxu0 0.0
    %1294 = vmatpush.msra.mxu0 0.0
    %1295 = vmatpush.msra.mxu0 0.0
    %1296 = vmatpush.msra.mxu0 0.0
    %1297 = vmatpush.msra.mxu0 0.0
    %1298 = vmatpush.msra.mxu0 0.0
    %1299 = vmatpush.msra.mxu0 %v1153
    %1300 = vmatmul.f32.gmra.mxu0 %v1282
    %v1301 = vpop.f32.mrf.mxu0
    %v1302 = vadd.f32 0.0, %v1301
    %1303 = vdwg.mxu0
    %1305 = vrot.lane.b32.xlu0 %v1302, 16
    %v1306 = vpop.permute.xlu0 %1305
    %v1308 = vsel %vm399, %v1229, %v1306
    %v1310 = vsel %vm399, %v991, 0
    %v1313 = vsel %vm399, %v1057, 0
    %1315 = vmatpush.xpose.msra.mxu0 0.0
    %1316 = vmatpush.xpose.msra.mxu0 0.0
    %1317 = vmatpush.xpose.msra.mxu0 0.0
    %1318 = vmatpush.xpose.msra.mxu0 0.0
    %1319 = vmatpush.xpose.msra.mxu0 0.0
    %1320 = vmatpush.xpose.msra.mxu0 0.0
    %1321 = vmatpush.xpose.msra.mxu0 0.0
    %1322 = vmatpush.xpose.msra.mxu0 0.0
    %1323 = vmatpush.xpose.msra.mxu0 0.0
    %1324 = vmatpush.xpose.msra.mxu0 0.0
    %1325 = vmatpush.xpose.msra.mxu0 0.0
    %1326 = vmatpush.xpose.msra.mxu0 0.0
    %1327 = vmatpush.xpose.msra.mxu0 0.0
    %1328 = vmatpush.xpose.msra.mxu0 0.0
    %1329 = vmatpush.xpose.msra.mxu0 0.0
    %1330 = vmatpush.xpose.msra.mxu0 %v1313
    %1331 = vmatmul.f32.gmra.mxu0 %v1310
    %v1332 = vpop.f32.mrf.mxu0
    %v1333 = vadd.f32 %v552, %v1332
    %1334 = vdwg.mxu0
    %v1335 = vsel %vm426, %v1333, -inf
    %1336 = vmax.xlane.f32.xlu0 %v1335
    %v1337 = vpop.xlane.xlu0 %1336
    %v1338 = vsub.f32 %v1333, %v1337
    %v1339 = vmul.f32 %v1338, 1.442695
    %v1340 = vpow.pop %v1339
    %v1341 = vsel %vm426, %v1340, 0.0
    %1342 = vadd.xlane.f32.xlu0 %v1341
    %v1343 = vpop.xlane.xlu0 %1342
    %v1344 = vrcp.pop %v1343
    %v1345 = vmul.f32 %v1343, %v1344
    %v1346 = vsub.f32 1.0, %v1345
    %v1347 = vmul.f32 %v1344, %v1346
    %v1348 = vadd.f32 %v1344, %v1347
    %vm1349 = vweird.f32 %v1343
    %vm1350 = vweird.f32 %v1344
    %vm1351 = vmor %vm1349, %vm1350
    %v1352 = vsel %vm1351, %v1344, %v1348
    %v1353 = vand.u32 2147483647, %v1343
    %vm1354 = vcmp.eq.f32.partialorder %v1353, 8.507059e+37
    %v1355 = vand.u32 %v1343, 2147483648
    %v1356 = vor.u32 1.1754944e-38, %v1355
    %v1357 = vsel %vm1354, %v1356, %v1352
    %v1358 = vmul.f32 %v1340, %v1357
    %v1360 = vsel %vm426, %v1358, 0
    %1362 = vmatpush.msra.mxu0 0.0
    %1363 = vmatpush.msra.mxu0 0.0
    %1364 = vmatpush.msra.mxu0 0.0
    %1365 = vmatpush.msra.mxu0 0.0
    %1366 = vmatpush.msra.mxu0 0.0
    %1367 = vmatpush.msra.mxu0 0.0
    %1368 = vmatpush.msra.mxu0 0.0
    %1369 = vmatpush.msra.mxu0 0.0
    %1370 = vmatpush.msra.mxu0 0.0
    %1371 = vmatpush.msra.mxu0 0.0
    %1372 = vmatpush.msra.mxu0 0.0
    %1373 = vmatpush.msra.mxu0 0.0
    %1374 = vmatpush.msra.mxu0 0.0
    %1375 = vmatpush.msra.mxu0 0.0
    %1376 = vmatpush.msra.mxu0 0.0
    %1377 = vmatpush.msra.mxu0 %v1123
    %1378 = vmatmul.f32.gmra.mxu0 %v1360
    %v1379 = vpop.f32.mrf.mxu0
    %v1380 = vadd.f32 0.0, %v1379
    %1381 = vdwg.mxu0
    %v1383 = vsel %vm399, %v1024, 0
    %v1386 = vsel %vm399, %v1090, 0
    %1388 = vmatpush.xpose.msra.mxu0 0.0
    %1389 = vmatpush.xpose.msra.mxu0 0.0
    %1390 = vmatpush.xpose.msra.mxu0 0.0
    %1391 = vmatpush.xpose.msra.mxu0 0.0
    %1392 = vmatpush.xpose.msra.mxu0 0.0
    %1393 = vmatpush.xpose.msra.mxu0 0.0
    %1394 = vmatpush.xpose.msra.mxu0 0.0
    %1395 = vmatpush.xpose.msra.mxu0 0.0
    %1396 = vmatpush.xpose.msra.mxu0 0.0
    %1397 = vmatpush.xpose.msra.mxu0 0.0
    %1398 = vmatpush.xpose.msra.mxu0 0.0
    %1399 = vmatpush.xpose.msra.mxu0 0.0
    %1400 = vmatpush.xpose.msra.mxu0 0.0
    %1401 = vmatpush.xpose.msra.mxu0 0.0
    %1402 = vmatpush.xpose.msra.mxu0 0.0
    %1403 = vmatpush.xpose.msra.mxu0 %v1386
    %1404 = vmatmul.f32.gmra.mxu0 %v1383
    %v1405 = vpop.f32.mrf.mxu0
    %v1406 = vadd.f32 %v552, %v1405
    %1407 = vdwg.mxu0
    %v1408 = vsel %vm426, %v1406, -inf
    %1409 = vmax.xlane.f32.xlu0 %v1408
    %v1410 = vpop.xlane.xlu0 %1409
    %v1411 = vsub.f32 %v1406, %v1410
    %v1412 = vmul.f32 %v1411, 1.442695
    %v1413 = vpow.pop %v1412
    %v1414 = vsel %vm426, %v1413, 0.0
    %1415 = vadd.xlane.f32.xlu0 %v1414
    %v1416 = vpop.xlane.xlu0 %1415
    %v1417 = vrcp.pop %v1416
    %v1418 = vmul.f32 %v1416, %v1417
    %v1419 = vsub.f32 1.0, %v1418
    %v1420 = vmul.f32 %v1417, %v1419
    %v1421 = vadd.f32 %v1417, %v1420
    %vm1422 = vweird.f32 %v1416
    %vm1423 = vweird.f32 %v1417
    %vm1424 = vmor %vm1422, %vm1423
    %v1425 = vsel %vm1424, %v1417, %v1421
    %v1426 = vand.u32 2147483647, %v1416
    %vm1427 = vcmp.eq.f32.partialorder %v1426, 8.507059e+37
    %v1428 = vand.u32 %v1416, 2147483648
    %v1429 = vor.u32 1.1754944e-38, %v1428
    %v1430 = vsel %vm1427, %v1429, %v1425
    %v1431 = vmul.f32 %v1413, %v1430
    %v1433 = vsel %vm426, %v1431, 0
    %1435 = vmatpush.msra.mxu0 0.0
    %1436 = vmatpush.msra.mxu0 0.0
    %1437 = vmatpush.msra.mxu0 0.0
    %1438 = vmatpush.msra.mxu0 0.0
    %1439 = vmatpush.msra.mxu0 0.0
    %1440 = vmatpush.msra.mxu0 0.0
    %1441 = vmatpush.msra.mxu0 0.0
    %1442 = vmatpush.msra.mxu0 0.0
    %1443 = vmatpush.msra.mxu0 0.0
    %1444 = vmatpush.msra.mxu0 0.0
    %1445 = vmatpush.msra.mxu0 0.0
    %1446 = vmatpush.msra.mxu0 0.0
    %1447 = vmatpush.msra.mxu0 0.0
    %1448 = vmatpush.msra.mxu0 0.0
    %1449 = vmatpush.msra.mxu0 0.0
    %1450 = vmatpush.msra.mxu0 %v1156
    %1451 = vmatmul.f32.gmra.mxu0 %v1433
    %v1452 = vpop.f32.mrf.mxu0
    %v1453 = vadd.f32 0.0, %v1452
    %1454 = vdwg.mxu0
    %1456 = vrot.lane.b32.xlu0 %v1453, 16
    %v1457 = vpop.permute.xlu0 %1456
    %v1459 = vsel %vm399, %v1380, %v1457
    %s1460 = scalar_lea.vmem %s12, 32
    %v1461 = vld [vmem:[%s1460] sm:$0xff]
    %v1462 = vld [vmem:[%s1460 + $0x8] sm:$0xff]
    %v1463 = vld [vmem:[%s1460 + $0x10] sm:$0xff]
    %v1464 = vld [vmem:[%s1460 + $0x18] sm:$0xff]
    %s1465 = scalar_lea.vmem %s13, 1
    %v1466 = vld [vmem:[%s1465] sm:$0x1]
    %v1468 = vperm.slane %v1466, 0
    %v1471 = vsel %vm134, %v1308, 0
    %v1474 = vsel %vm134, %v1459, 0
    %1476 = vmatpush.msra.mxu0 0.0
    %1477 = vmatpush.msra.mxu0 0.0
    %1478 = vmatpush.msra.mxu0 0.0
    %1479 = vmatpush.msra.mxu0 0.0
    %1480 = vmatpush.msra.mxu0 0.0
    %1481 = vmatpush.msra.mxu0 0.0
    %1482 = vmatpush.msra.mxu0 0.0
    %1483 = vmatpush.msra.mxu0 0.0
    %1484 = vmatpush.msra.mxu0 0.0
    %1485 = vmatpush.msra.mxu0 0.0
    %1486 = vmatpush.msra.mxu0 0.0
    %1487 = vmatpush.msra.mxu0 0.0
    %1488 = vmatpush.msra.mxu0 %v1464
    %1489 = vmatpush.msra.mxu0 %v1463
    %1490 = vmatpush.msra.mxu0 %v1462
    %1491 = vmatpush.msra.mxu0 %v1461
    %1492 = vmatmul.f32.gmra.mxu0 %v1471
    %v1493 = vpop.f32.mrf.mxu0
    %v1494 = vadd.f32 %v1468, %v1493
    %1495 = vmatmul.f32.gmra.mxu0 %v1474
    %v1496 = vpop.f32.mrf.mxu0
    %v1497 = vadd.f32 %v1468, %v1496
    %1498 = vdwg.mxu0
    %v1499 = vadd.f32 %v1494, %v952
    %v1500 = vadd.f32 %v1497, %v953
    %s1501 = scalar_lea.vmem %s18, 1
    %v1502 = vld [vmem:[%s1501] sm:$0x1]
    %s1503 = scalar_lea.vmem %s19, 1
    %v1504 = vld [vmem:[%s1503] sm:$0x1]
    %v1505 = vsel %vm134, %v1499, 0.0
    %1506 = vadd.xlane.f32.xlu0 %v1505
    %v1507 = vpop.xlane.xlu0 %1506
    %v1508 = vsel %vm134, %v1500, 0.0
    %1509 = vadd.xlane.f32.xlu0 %v1508
    %v1510 = vpop.xlane.xlu0 %1509
    %v1511 = vmul.f32 %v1507, %v147
    %v1512 = vmul.f32 %v1510, %v147
    %v1513 = vsub.f32 %v1499, %v1511
    %v1514 = vsub.f32 %v1500, %v1512
    %v1515 = vmul.f32 %v1513, %v1513
    %v1516 = vmul.f32 %v1514, %v1514
    %v1517 = vsel %vm134, %v1515, 0.0
    %1518 = vadd.xlane.f32.xlu0 %v1517
    %v1519 = vpop.xlane.xlu0 %1518
    %v1520 = vsel %vm134, %v1516, 0.0
    %1521 = vadd.xlane.f32.xlu0 %v1520
    %v1522 = vpop.xlane.xlu0 %1521
    %v1523 = vmul.f32 %v1519, %v147
    %v1524 = vmul.f32 %v1522, %v147
    %v1525 = vadd.f32 %v1523, 1e-12
    %v1526 = vadd.f32 %v1524, 1e-12
    %v1527 = vrsqrt.pop %v1525
    %v1528 = vmul.f32 %v1527, %v1525
    %v1529 = vmul.f32 %v1528, %v1527
    %v1530 = vmul.f32 0.5, %v1529
    %v1531 = vsub.f32 1.5, %v1530
    %v1532 = vmul.f32 %v1527, %v1531
    %vm1533 = vweird.f32 %v1525
    %vm1534 = vweird.f32 %v1527
    %vm1535 = vmor %vm1533, %vm1534
    %v1536 = vsel %vm1535, %v1527, %v1532
    %v1537 = vrsqrt.pop %v1526
    %v1538 = vmul.f32 %v1537, %v1526
    %v1539 = vmul.f32 %v1538, %v1537
    %v1540 = vmul.f32 0.5, %v1539
    %v1541 = vsub.f32 1.5, %v1540
    %v1542 = vmul.f32 %v1537, %v1541
    %vm1543 = vweird.f32 %v1526
    %vm1544 = vweird.f32 %v1537
    %vm1545 = vmor %vm1543, %vm1544
    %v1546 = vsel %vm1545, %v1537, %v1542
    %v1547 = vmul.f32 %v1513, %v1536
    %v1548 = vmul.f32 %v1514, %v1546
    %v1550 = vperm.slane %v1502, 0
    %v1552 = vmul.f32 %v1547, %v1550
    %v1553 = vmul.f32 %v1548, %v1550
    %v1555 = vperm.slane %v1504, 0
    %v1557 = vadd.f32 %v1552, %v1555
    %v1558 = vadd.f32 %v1553, %v1555
    %s1559 = scalar_lea.vmem %s14, 32
    %v1560 = vld [vmem:[%s1559] sm:$0xff]
    %v1561 = vld [vmem:[%s1559 + $0x8] sm:$0xff]
    %v1562 = vld [vmem:[%s1559 + $0x10] sm:$0xff]
    %v1563 = vld [vmem:[%s1559 + $0x18] sm:$0xff]
    %s1564 = scalar_lea.vmem %s15, 1
    %v1565 = vld [vmem:[%s1564] sm:$0x1]
    %v1567 = vperm.slane %v1565, 0
    %v1570 = vsel %vm134, %v1557, 0
    %v1573 = vsel %vm134, %v1558, 0
    %1575 = vmatpush.msra.mxu0 0.0
    %1576 = vmatpush.msra.mxu0 0.0
    %1577 = vmatpush.msra.mxu0 0.0
    %1578 = vmatpush.msra.mxu0 0.0
    %1579 = vmatpush.msra.mxu0 0.0
    %1580 = vmatpush.msra.mxu0 0.0
    %1581 = vmatpush.msra.mxu0 0.0
    %1582 = vmatpush.msra.mxu0 0.0
    %1583 = vmatpush.msra.mxu0 0.0
    %1584 = vmatpush.msra.mxu0 0.0
    %1585 = vmatpush.msra.mxu0 0.0
    %1586 = vmatpush.msra.mxu0 0.0
    %1587 = vmatpush.msra.mxu0 %v1563
    %1588 = vmatpush.msra.mxu0 %v1562
    %1589 = vmatpush.msra.mxu0 %v1561
    %1590 = vmatpush.msra.mxu0 %v1560
    %1591 = vmatmul.f32.gmra.mxu0 %v1570
    %v1592 = vpop.f32.mrf.mxu0
    %v1593 = vadd.f32 %v1567, %v1592
    %1594 = vmatmul.f32.gmra.mxu0 %v1573
    %v1595 = vpop.f32.mrf.mxu0
    %v1596 = vadd.f32 %v1567, %v1595
    %1597 = vdwg.mxu0
    %v1598 = vmul.f32 %v1593, %v1593
    %v1599 = vmul.f32 %v1596, %v1596
    %v1600 = vmul.f32 %v1593, %v1598
    %v1601 = vmul.f32 %v1596, %v1599
    %v1602 = vmul.f32 %v1600, 0.044715
    %v1603 = vmul.f32 %v1601, 0.044715
    %v1604 = vadd.f32 %v1593, %v1602
    %v1605 = vadd.f32 %v1596, %v1603
    %v1606 = vmul.f32 %v1604, 0.7978846
    %v1607 = vmul.f32 %v1605, 0.7978846
    %v1608 = vtanh.pop %v1606
    %v1609 = vtanh.pop %v1607
    %v1610 = vadd.f32 %v1608, 1.0
    %v1611 = vadd.f32 %v1609, 1.0
    %v1612 = vmul.f32 %v1610, 0.5
    %v1613 = vmul.f32 %v1611, 0.5
    %v1614 = vmul.f32 %v1593, %v1612
    %v1615 = vmul.f32 %v1596, %v1613
    %s1616 = scalar_lea.vmem %s16, 64
    %v1617 = vld [vmem:[%s1616] sm:$0xff]
    %v1618 = vld [vmem:[%s1616 + $0x8] sm:$0xff]
    %v1619 = vld [vmem:[%s1616 + $0x10] sm:$0xff]
    %v1620 = vld [vmem:[%s1616 + $0x18] sm:$0xff]
    %v1621 = vld [vmem:[%s1616 + $0x20] sm:$0xff]
    %v1622 = vld [vmem:[%s1616 + $0x28] sm:$0xff]
    %v1623 = vld [vmem:[%s1616 + $0x30] sm:$0xff]
    %v1624 = vld [vmem:[%s1616 + $0x38] sm:$0xff]
    %s1625 = scalar_lea.vmem %s17, 1
    %v1626 = vld [vmem:[%s1625] sm:$0x1]
    %v1628 = vperm.slane %v1626, 0
    %v1631 = vsel %vm866, %v1614, 0
    %v1634 = vsel %vm866, %v1615, 0
    %1636 = vmatpush.msra.mxu0 0.0
    %1637 = vmatpush.msra.mxu0 0.0
    %1638 = vmatpush.msra.mxu0 0.0
    %1639 = vmatpush.msra.mxu0 0.0
    %1640 = vmatpush.msra.mxu0 0.0
    %1641 = vmatpush.msra.mxu0 0.0
    %1642 = vmatpush.msra.mxu0 0.0
    %1643 = vmatpush.msra.mxu0 0.0
    %1644 = vmatpush.msra.mxu0 %v1624
    %1645 = vmatpush.msra.mxu0 %v1623
    %1646 = vmatpush.msra.mxu0 %v1622
    %1647 = vmatpush.msra.mxu0 %v1621
    %1648 = vmatpush.msra.mxu0 %v1620
    %1649 = vmatpush.msra.mxu0 %v1619
    %1650 = vmatpush.msra.mxu0 %v1618
    %1651 = vmatpush.msra.mxu0 %v1617
    %1652 = vmatmul.f32.gmra.mxu0 %v1631
    %v1653 = vpop.f32.mrf.mxu0
    %v1654 = vadd.f32 %v1628, %v1653
    %1655 = vmatmul.f32.gmra.mxu0 %v1634
    %v1656 = vpop.f32.mrf.mxu0
    %v1657 = vadd.f32 %v1628, %v1656
    %1658 = vdwg.mxu0
    %v1659 = vadd.f32 %v1654, %v1557
    %v1660 = vadd.f32 %v1657, %v1558
    %s1661 = scalar_lea.vmem %s20, 1
    %v1662 = vld [vmem:[%s1661] sm:$0x1]
    %s1663 = scalar_lea.vmem %s21, 1
    %v1664 = vld [vmem:[%s1663] sm:$0x1]
    %v1665 = vsel %vm134, %v1659, 0.0
    %1666 = vadd.xlane.f32.xlu0 %v1665
    %v1667 = vpop.xlane.xlu0 %1666
    %v1668 = vsel %vm134, %v1660, 0.0
    %1669 = vadd.xlane.f32.xlu0 %v1668
    %v1670 = vpop.xlane.xlu0 %1669
    %v1671 = vmul.f32 %v1667, %v147
    %v1672 = vmul.f32 %v1670, %v147
    %v1673 = vsub.f32 %v1659, %v1671
    %v1674 = vsub.f32 %v1660, %v1672
    %v1675 = vmul.f32 %v1673, %v1673
    %v1676 = vmul.f32 %v1674, %v1674
    %v1677 = vsel %vm134, %v1675, 0.0
    %1678 = vadd.xlane.f32.xlu0 %v1677
    %v1679 = vpop.xlane.xlu0 %1678
    %v1680 = vsel %vm134, %v1676, 0.0
    %1681 = vadd.xlane.f32.xlu0 %v1680
    %v1682 = vpop.xlane.xlu0 %1681
    %v1683 = vmul.f32 %v1679, %v147
    %v1684 = vmul.f32 %v1682, %v147
    %v1685 = vadd.f32 %v1683, 1e-12
    %v1686 = vadd.f32 %v1684, 1e-12
    %v1687 = vrsqrt.pop %v1685
    %v1688 = vmul.f32 %v1687, %v1685
    %v1689 = vmul.f32 %v1688, %v1687
    %v1690 = vmul.f32 0.5, %v1689
    %v1691 = vsub.f32 1.5, %v1690
    %v1692 = vmul.f32 %v1687, %v1691
    %vm1693 = vweird.f32 %v1685
    %vm1694 = vweird.f32 %v1687
    %vm1695 = vmor %vm1693, %vm1694
    %v1696 = vsel %vm1695, %v1687, %v1692
    %v1697 = vrsqrt.pop %v1686
    %v1698 = vmul.f32 %v1697, %v1686
    %v1699 = vmul.f32 %v1698, %v1697
    %v1700 = vmul.f32 0.5, %v1699
    %v1701 = vsub.f32 1.5, %v1700
    %v1702 = vmul.f32 %v1697, %v1701
    %vm1703 = vweird.f32 %v1686
    %vm1704 = vweird.f32 %v1697
    %vm1705 = vmor %vm1703, %vm1704
    %v1706 = vsel %vm1705, %v1697, %v1702
    %v1707 = vmul.f32 %v1673, %v1696
    %v1708 = vmul.f32 %v1674, %v1706
    %v1710 = vperm.slane %v1662, 0
    %v1712 = vmul.f32 %v1707, %v1710
    %v1713 = vmul.f32 %v1708, %v1710
    %v1715 = vperm.slane %v1664, 0
    %v1717 = vadd.f32 %v1712, %v1715
    %v1718 = vadd.f32 %v1713, %v1715
    %v1720 = vrot.slane %v1718, 7
    %vm1722 = vcmask 1040384
    %v1723 = vsel %vm1722, %v1717, %v1720
    %v1724 = vld [vmem:[%s22] sm:$0xff]
    %v1725 = vld [vmem:[%s22 + $0x8] sm:$0xff]
    %v1726 = vld [vmem:[%s22 + $0x10] sm:$0xff]
    %v1727 = vld [vmem:[%s22 + $0x18] sm:$0xff]
    %v1728 = vld [vmem:[%s23] sm:$0x1]
    %v1730 = vperm.slane %v1728, 0
    %v1733 = vsel %vm134, %v1723, 0
    %1735 = vmatpush.msra.mxu0 0.0
    %1736 = vmatpush.msra.mxu0 0.0
    %1737 = vmatpush.msra.mxu0 0.0
    %1738 = vmatpush.msra.mxu0 0.0
    %1739 = vmatpush.msra.mxu0 0.0
    %1740 = vmatpush.msra.mxu0 0.0
    %1741 = vmatpush.msra.mxu0 0.0
    %1742 = vmatpush.msra.mxu0 0.0
    %1743 = vmatpush.msra.mxu0 0.0
    %1744 = vmatpush.msra.mxu0 0.0
    %1745 = vmatpush.msra.mxu0 0.0
    %1746 = vmatpush.msra.mxu0 0.0
    %1747 = vmatpush.msra.mxu0 %v1727
    %1748 = vmatpush.msra.mxu0 %v1726
    %1749 = vmatpush.msra.mxu0 %v1725
    %1750 = vmatpush.msra.mxu0 %v1724
    %1751 = vmatmul.f32.gmra.mxu0 %v1733
    %v1752 = vpop.f32.mrf.mxu0
    %v1753 = vadd.f32 %v1730, %v1752
    %1754 = vdwg.mxu0
    %1755 = vst [vmem:[#allocation2] sm:$0x3] %v1753
    // Predicated region
    $region98: #{my_model_forward.1} parent=1 // pred_check
      _
    $region99: #{my_model_forward.1} parent=1 // pred_check_branch
      %1757 = sbr.rel (0) target = $region101
    $region100: #{my_model_forward.1} parent=1 // pred_region
      %1759 = vsyncadd [#allocation3], 0
      %s1761 = sshll.u32 [#allocation2], 4
      %s1762 = int_to_ptr.vmem [resolvable:$true] %s1761
      %s1763 = sshll.u32 %s24, 4
      %s1764 = int_to_ptr.hbm [resolvable:$true] %s1763
      %1766 = dma.vmem_to_hbm [thread:$0]  %s1762, 32, %s1764, [#allocation3]
    $region101: #{my_model_forward.1} parent=1 // pred_fallthru
      _
    // Predicated region
    $region102: #{my_model_forward.1} parent=1 // pred_check
      _
    $region103: #{my_model_forward.1} parent=1 // pred_check_branch
      %1768 = sbr.rel (0) target = $region105
    $region104: #{my_model_forward.1} parent=1 // pred_region
      %1770 = dma.done [#allocation3], 32
    $region105: #{my_model_forward.1} parent=1 // pred_fallthru
      _
    %1771 = vsyncpa [#allocation3], 1

</llo_original>
